<compile_context>
chip_gen: v7x
topology: tpu7x:2x2x1
jax: 0.10.0
libtpu: 0.0.40
codegen_flags: <defaults>
</compile_context>

<pallas_src>
import math

import jax
import jax.numpy as jnp
from jax.experimental import pallas as pl
from jax.experimental.pallas import tpu as pltpu


_CHUNK = 256  # hidden-dim blocking for the fc2 -> ReLU -> fc3 pair


def _round_up(n, m):
    return ((n + m - 1) // m) * m


def _fused_mlp_kernel(x_ref,
                      w1, b1, w2, b2, w3, b3, w4, b4, w5, b5, w6, b6,
                      o_ref):
    """All six layers back-to-back; intermediates never leave VMEM/vregs.

    Activations/weights are bf16; every matmul accumulates in f32 on the MXU.
    """

    def dense(h, w_ref, b_ref):
        y = jnp.dot(h, w_ref[...], preferred_element_type=jnp.float32)
        return y + b_ref[...]          # (1, out) f32 bias broadcasts over rows

    def relu_bf16(y):
        return jnp.maximum(y, 0.0).astype(jnp.bfloat16)

    # fc1
    h = relu_bf16(dense(x_ref[...], w1, b1))              # (TB, 128) bf16

    # fc2 -> ReLU -> fc3, blocked over the 1024-wide hidden dim so the
    # (TB, 1024) f32 intermediate never materializes.  Static 256-wide slices
    # of w2 (lane dim) and w3 (sublane dim) stay (8,128)/(16,128)-aligned.
    hidden = w2.shape[1]
    acc = jnp.zeros((h.shape[0], w3.shape[1]), jnp.float32)
    for c in range(hidden // _CHUNK):                      # fully unrolled
        col = c * _CHUNK
        y2 = jnp.dot(h, w2[:, col:col + _CHUNK],
                     preferred_element_type=jnp.float32)
        a2 = jnp.maximum(y2 + b2[:, col:col + _CHUNK], 0.0).astype(jnp.bfloat16)
        acc = acc + jnp.dot(a2, w3[col:col + _CHUNK, :],
                            preferred_element_type=jnp.float32)
    h = relu_bf16(acc + b3[...])                           # (TB, 128) bf16

    # fc4, fc5
    h = relu_bf16(dense(h, w4, b4))
    h = relu_bf16(dense(h, w5, b5))

    # fc6 + sigmoid: exp and approx reciprocal both run on the EUP slot.
    y = dense(h, w6, b6)                                   # (TB, 128) f32
    o_ref[...] = pl.reciprocal(1.0 + jnp.exp(-y), approx=True).astype(o_ref.dtype)


def init_params(key, input_size, output_size):
    """PyTorch-default U(-1/sqrt(fan_in), 1/sqrt(fan_in)) init.

    Weights stored as (in, out) = transpose of PyTorch's (out, in).
    """
    dims = [(input_size, 100), (100, 1000), (1000, 100),
            (100, 100), (100, 100), (100, output_size)]
    params = []
    for i, (fan_in, fan_out) in enumerate(dims):
        kw, kb = jax.random.split(jax.random.fold_in(key, i))
        bound = 1.0 / math.sqrt(fan_in)
        w = jax.random.uniform(kw, (fan_in, fan_out), jnp.float32, -bound, bound)
        b = jax.random.uniform(kb, (fan_out,), jnp.float32, -bound, bound)
        params.append((w, b))
    return params


def pad_params(params):
    """Zero-pad to 128-multiple feature dims; bf16 weights, f32 biases."""
    padded = []
    for w, b in params:
        fi, fo = w.shape
        fi_p, fo_p = _round_up(fi, 128), _round_up(fo, 128)
        wp = jnp.zeros((fi_p, fo_p), jnp.bfloat16).at[:fi, :fo].set(
            w.astype(jnp.bfloat16))
        bp = jnp.zeros((1, fo_p), jnp.float32).at[:, :fo].set(b)
        padded.append((wp, bp))
    return padded


def _pick_batch_tile(B):
    """Batch tile selection.

    * B >= 512: 256-row tiles (amortize per-step overhead, better MXU M-fill).
    * 16 <= B < 512: size the tile so the grid has >= 2 programs, so the
      "parallel" grid axis can occupy both v7x TensorCores.
    * Tiny batches: one 16-row tile (launch/DMA bound anyway).
    Multiples of 16 keep bf16 activation blocks (16,128)-aligned.
    """
    if B >= 512:
        return 256
    if B >= 16:
        return min(128, _round_up(-(-B // 2), 16))
    return 16


def model_forward(x, padded_params, output_size):
    """Single fused pallas_call over a batch grid; returns (B, output_size)."""
    B, F = x.shape
    in_pad = padded_params[0][0].shape[0]
    out_pad = padded_params[-1][0].shape[1]

    TB = _pick_batch_tile(B)
    B_pad = _round_up(B, TB)

    # bf16 activations, zero-padded (padded lanes stay exactly 0 through ReLU).
    xp = jnp.zeros((B_pad, in_pad), jnp.bfloat16).at[:B, :F].set(
        x.astype(jnp.bfloat16))

    flat_wb = []
    weight_specs = []
    for w, b in padded_params:
        flat_wb += [w, b]
        # Constant index_map -> DMA'd once, VMEM-resident across batch tiles.
        weight_specs += [pl.BlockSpec(w.shape, lambda i: (0, 0)),
                         pl.BlockSpec(b.shape, lambda i: (0, 0))]

    flops = 2 * B_pad * sum(w.shape[0] * w.shape[1] for w, _ in padded_params)
    bytes_accessed = (2 * xp.size + 4 * B_pad * out_pad
                      + sum(2 * w.size + 4 * b.size for w, b in padded_params))
    transcendentals = 2 * B_pad * out_pad   # final exp + approx reciprocal

    out = pl.pallas_call(
        _fused_mlp_kernel,
        out_shape=jax.ShapeDtypeStruct((B_pad, out_pad), jnp.float32),
        grid_spec=pltpu.PrefetchScalarGridSpec(
            num_scalar_prefetch=0,
            grid=(B_pad // TB,),
            in_specs=[pl.BlockSpec((TB, in_pad), lambda i: (i, 0))] + weight_specs,
            out_specs=pl.BlockSpec((TB, out_pad), lambda i: (i, 0)),
        ),
        compiler_params=pltpu.CompilerParams(
            dimension_semantics=("parallel",)),
        cost_estimate=pl.CostEstimate(
            flops=flops,
            transcendentals=transcendentals,
            bytes_accessed=bytes_accessed),
    )(xp, *flat_wb)

    # Slice away batch padding and padded output lanes (sigmoid(0)=0.5 there).
    return out[:B, :output_size]


if __name__ == "__main__":
    key = jax.random.PRNGKey(0)
    batch, input_size, output_size = 2, 32, 8

    kx, kp = jax.random.split(key)
    x = jax.random.normal(kx, (batch, input_size), jnp.float32)
    params = init_params(kp, input_size, output_size)
    padded = pad_params(params)

    fwd = jax.jit(lambda xx, pp: model_forward(xx, pp, output_size))
    out = jax.block_until_ready(fwd(x, padded))

    # Sanity: correct shape, sigmoid output range.
    assert out.shape == (batch, output_size)
    assert bool(jnp.all(out >= 0.0)) and bool(jnp.all(out <= 1.0))

    # Precision-matched reference: bf16 weights/activations, f32 accumulation.
    h = x.astype(jnp.bfloat16)
    for i, (w, b) in enumerate(params):
        y = jnp.dot(h, w.astype(jnp.bfloat16),
                    preferred_element_type=jnp.float32) + b
        h = jnp.maximum(y, 0.0).astype(jnp.bfloat16) if i < 5 else jax.nn.sigmoid(y)
    assert bool(jnp.allclose(out, h, atol=1e-2, rtol=1e-2))

    # Loose sanity check against the full-f32 reference (bf16 rounding slack).
    ref = x
    for i, (w, b) in enumerate(params):
        ref = ref @ w + b
        ref = jnp.maximum(ref, 0.0) if i < 5 else jax.nn.sigmoid(ref)
    assert bool(jnp.allclose(out, ref, atol=5e-2, rtol=5e-2))

    print("KERNEL_OK")
</pallas_src>

<mosaic_0001>
module attributes {stable_mosaic.version = 11 : i64} {
  func.func @_fused_mlp_kernel(%arg0: i32, %arg1: memref<16x128xbf16, #tpu.memory_space<vmem>>, %arg2: memref<128x128xbf16, #tpu.memory_space<vmem>>, %arg3: memref<1x128xf32, #tpu.memory_space<vmem>>, %arg4: memref<128x1024xbf16, #tpu.memory_space<vmem>>, %arg5: memref<1x1024xf32, #tpu.memory_space<vmem>>, %arg6: memref<1024x128xbf16, #tpu.memory_space<vmem>>, %arg7: memref<1x128xf32, #tpu.memory_space<vmem>>, %arg8: memref<128x128xbf16, #tpu.memory_space<vmem>>, %arg9: memref<1x128xf32, #tpu.memory_space<vmem>>, %arg10: memref<128x128xbf16, #tpu.memory_space<vmem>>, %arg11: memref<1x128xf32, #tpu.memory_space<vmem>>, %arg12: memref<128x128xbf16, #tpu.memory_space<vmem>>, %arg13: memref<1x128xf32, #tpu.memory_space<vmem>>, %arg14: memref<16x128xf32, #tpu.memory_space<vmem>>) attributes {dimension_semantics = [#tpu.dimension_semantics<parallel>], iteration_bounds = array<i64: 1>, scalar_prefetch = 0 : i64, scratch_operands = 0 : i64, tpu.core_type = #tpu.core_type<tc>, window_params = [{transform_indices = @transform_0, window_bounds = array<i64: 16, 128>}, {pipeline_mode = #tpu.pipeline_mode<synchronous>, transform_indices = @transform_1, window_bounds = array<i64: 128, 128>}, {pipeline_mode = #tpu.pipeline_mode<synchronous>, transform_indices = @transform_2, window_bounds = array<i64: 1, 128>}, {pipeline_mode = #tpu.pipeline_mode<synchronous>, transform_indices = @transform_3, window_bounds = array<i64: 128, 1024>}, {pipeline_mode = #tpu.pipeline_mode<synchronous>, transform_indices = @transform_4, window_bounds = array<i64: 1, 1024>}, {pipeline_mode = #tpu.pipeline_mode<synchronous>, transform_indices = @transform_5, window_bounds = array<i64: 1024, 128>}, {pipeline_mode = #tpu.pipeline_mode<synchronous>, transform_indices = @transform_6, window_bounds = array<i64: 1, 128>}, {pipeline_mode = #tpu.pipeline_mode<synchronous>, transform_indices = @transform_7, window_bounds = array<i64: 128, 128>}, {pipeline_mode = #tpu.pipeline_mode<synchronous>, transform_indices = @transform_8, window_bounds = array<i64: 1, 128>}, {pipeline_mode = #tpu.pipeline_mode<synchronous>, transform_indices = @transform_9, window_bounds = array<i64: 128, 128>}, {pipeline_mode = #tpu.pipeline_mode<synchronous>, transform_indices = @transform_10, window_bounds = array<i64: 1, 128>}, {pipeline_mode = #tpu.pipeline_mode<synchronous>, transform_indices = @transform_11, window_bounds = array<i64: 128, 128>}, {pipeline_mode = #tpu.pipeline_mode<synchronous>, transform_indices = @transform_12, window_bounds = array<i64: 1, 128>}, {transform_indices = @transform_13, window_bounds = array<i64: 16, 128>}]} {
    %c0 = arith.constant 0 : index
    %c0_0 = arith.constant 0 : index
    %0 = vector.load %arg1[%c0, %c0_0] : memref<16x128xbf16, #tpu.memory_space<vmem>>, vector<16x128xbf16>
    %c0_1 = arith.constant 0 : index
    %c0_2 = arith.constant 0 : index
    %1 = vector.load %arg2[%c0_1, %c0_2] : memref<128x128xbf16, #tpu.memory_space<vmem>>, vector<128x128xbf16>
    %cst = arith.constant dense<0.000000e+00> : vector<16x128xf32>
    %2 = tpu.matmul %0, %1, %cst {dimension_numbers = #tpu.dot_dimension_numbers<[1], [0], [0], [1], [0, 0, 1, 1], [], []>} : vector<16x128xbf16>, vector<128x128xbf16>, vector<16x128xf32> -> vector<16x128xf32>
    %c0_3 = arith.constant 0 : index
    %c0_4 = arith.constant 0 : index
    %3 = vector.load %arg3[%c0_3, %c0_4] : memref<1x128xf32, #tpu.memory_space<vmem>>, vector<1x128xf32>
    %4 = vector.broadcast %3 : vector<1x128xf32> to vector<16x128xf32>
    %5 = arith.addf %2, %4 : vector<16x128xf32>
    %cst_5 = arith.constant 0.000000e+00 : f32
    %6 = vector.broadcast %cst_5 : f32 to vector<16x128xf32>
    %7 = arith.maximumf %5, %6 : vector<16x128xf32>
    %8 = arith.truncf %7 : vector<16x128xf32> to vector<16x128xbf16>
    %cst_6 = arith.constant 0.000000e+00 : f32
    %9 = vector.broadcast %cst_6 : f32 to vector<16x128xf32>
    %c0_7 = arith.constant 0 : index
    %c0_8 = arith.constant 0 : index
    %10 = vector.load %arg4[%c0_7, %c0_8] : memref<128x1024xbf16, #tpu.memory_space<vmem>>, vector<128x256xbf16>
    %cst_9 = arith.constant dense<0.000000e+00> : vector<16x256xf32>
    %11 = tpu.matmul %8, %10, %cst_9 {dimension_numbers = #tpu.dot_dimension_numbers<[1], [0], [0], [1], [0, 0, 1, 1], [], []>} : vector<16x128xbf16>, vector<128x256xbf16>, vector<16x256xf32> -> vector<16x256xf32>
    %c0_10 = arith.constant 0 : index
    %c0_11 = arith.constant 0 : index
    %12 = vector.load %arg5[%c0_10, %c0_11] : memref<1x1024xf32, #tpu.memory_space<vmem>>, vector<1x256xf32>
    %13 = vector.broadcast %12 : vector<1x256xf32> to vector<16x256xf32>
    %14 = arith.addf %11, %13 : vector<16x256xf32>
    %cst_12 = arith.constant 0.000000e+00 : f32
    %15 = vector.broadcast %cst_12 : f32 to vector<16x256xf32>
    %16 = arith.maximumf %14, %15 : vector<16x256xf32>
    %17 = arith.truncf %16 : vector<16x256xf32> to vector<16x256xbf16>
    %c0_13 = arith.constant 0 : index
    %c0_14 = arith.constant 0 : index
    %18 = vector.load %arg6[%c0_13, %c0_14] : memref<1024x128xbf16, #tpu.memory_space<vmem>>, vector<256x128xbf16>
    %cst_15 = arith.constant dense<0.000000e+00> : vector<16x128xf32>
    %19 = tpu.matmul %17, %18, %cst_15 {dimension_numbers = #tpu.dot_dimension_numbers<[1], [0], [0], [1], [0, 0, 1, 1], [], []>} : vector<16x256xbf16>, vector<256x128xbf16>, vector<16x128xf32> -> vector<16x128xf32>
    %20 = arith.addf %9, %19 : vector<16x128xf32>
    %c0_16 = arith.constant 0 : index
    %c256 = arith.constant 256 : index
    %21 = vector.load %arg4[%c0_16, %c256] : memref<128x1024xbf16, #tpu.memory_space<vmem>>, vector<128x256xbf16>
    %cst_17 = arith.constant dense<0.000000e+00> : vector<16x256xf32>
    %22 = tpu.matmul %8, %21, %cst_17 {dimension_numbers = #tpu.dot_dimension_numbers<[1], [0], [0], [1], [0, 0, 1, 1], [], []>} : vector<16x128xbf16>, vector<128x256xbf16>, vector<16x256xf32> -> vector<16x256xf32>
    %c0_18 = arith.constant 0 : index
    %c256_19 = arith.constant 256 : index
    %23 = vector.load %arg5[%c0_18, %c256_19] : memref<1x1024xf32, #tpu.memory_space<vmem>>, vector<1x256xf32>
    %24 = vector.broadcast %23 : vector<1x256xf32> to vector<16x256xf32>
    %25 = arith.addf %22, %24 : vector<16x256xf32>
    %cst_20 = arith.constant 0.000000e+00 : f32
    %26 = vector.broadcast %cst_20 : f32 to vector<16x256xf32>
    %27 = arith.maximumf %25, %26 : vector<16x256xf32>
    %28 = arith.truncf %27 : vector<16x256xf32> to vector<16x256xbf16>
    %c256_21 = arith.constant 256 : index
    %c0_22 = arith.constant 0 : index
    %29 = vector.load %arg6[%c256_21, %c0_22] : memref<1024x128xbf16, #tpu.memory_space<vmem>>, vector<256x128xbf16>
    %cst_23 = arith.constant dense<0.000000e+00> : vector<16x128xf32>
    %30 = tpu.matmul %28, %29, %cst_23 {dimension_numbers = #tpu.dot_dimension_numbers<[1], [0], [0], [1], [0, 0, 1, 1], [], []>} : vector<16x256xbf16>, vector<256x128xbf16>, vector<16x128xf32> -> vector<16x128xf32>
    %31 = arith.addf %20, %30 : vector<16x128xf32>
    %c0_24 = arith.constant 0 : index
    %c512 = arith.constant 512 : index
    %32 = vector.load %arg4[%c0_24, %c512] : memref<128x1024xbf16, #tpu.memory_space<vmem>>, vector<128x256xbf16>
    %cst_25 = arith.constant dense<0.000000e+00> : vector<16x256xf32>
    %33 = tpu.matmul %8, %32, %cst_25 {dimension_numbers = #tpu.dot_dimension_numbers<[1], [0], [0], [1], [0, 0, 1, 1], [], []>} : vector<16x128xbf16>, vector<128x256xbf16>, vector<16x256xf32> -> vector<16x256xf32>
    %c0_26 = arith.constant 0 : index
    %c512_27 = arith.constant 512 : index
    %34 = vector.load %arg5[%c0_26, %c512_27] : memref<1x1024xf32, #tpu.memory_space<vmem>>, vector<1x256xf32>
    %35 = vector.broadcast %34 : vector<1x256xf32> to vector<16x256xf32>
    %36 = arith.addf %33, %35 : vector<16x256xf32>
    %cst_28 = arith.constant 0.000000e+00 : f32
    %37 = vector.broadcast %cst_28 : f32 to vector<16x256xf32>
    %38 = arith.maximumf %36, %37 : vector<16x256xf32>
    %39 = arith.truncf %38 : vector<16x256xf32> to vector<16x256xbf16>
    %c512_29 = arith.constant 512 : index
    %c0_30 = arith.constant 0 : index
    %40 = vector.load %arg6[%c512_29, %c0_30] : memref<1024x128xbf16, #tpu.memory_space<vmem>>, vector<256x128xbf16>
    %cst_31 = arith.constant dense<0.000000e+00> : vector<16x128xf32>
    %41 = tpu.matmul %39, %40, %cst_31 {dimension_numbers = #tpu.dot_dimension_numbers<[1], [0], [0], [1], [0, 0, 1, 1], [], []>} : vector<16x256xbf16>, vector<256x128xbf16>, vector<16x128xf32> -> vector<16x128xf32>
    %42 = arith.addf %31, %41 : vector<16x128xf32>
    %c0_32 = arith.constant 0 : index
    %c768 = arith.constant 768 : index
    %43 = vector.load %arg4[%c0_32, %c768] : memref<128x1024xbf16, #tpu.memory_space<vmem>>, vector<128x256xbf16>
    %cst_33 = arith.constant dense<0.000000e+00> : vector<16x256xf32>
    %44 = tpu.matmul %8, %43, %cst_33 {dimension_numbers = #tpu.dot_dimension_numbers<[1], [0], [0], [1], [0, 0, 1, 1], [], []>} : vector<16x128xbf16>, vector<128x256xbf16>, vector<16x256xf32> -> vector<16x256xf32>
    %c0_34 = arith.constant 0 : index
    %c768_35 = arith.constant 768 : index
    %45 = vector.load %arg5[%c0_34, %c768_35] : memref<1x1024xf32, #tpu.memory_space<vmem>>, vector<1x256xf32>
    %46 = vector.broadcast %45 : vector<1x256xf32> to vector<16x256xf32>
    %47 = arith.addf %44, %46 : vector<16x256xf32>
    %cst_36 = arith.constant 0.000000e+00 : f32
    %48 = vector.broadcast %cst_36 : f32 to vector<16x256xf32>
    %49 = arith.maximumf %47, %48 : vector<16x256xf32>
    %50 = arith.truncf %49 : vector<16x256xf32> to vector<16x256xbf16>
    %c768_37 = arith.constant 768 : index
    %c0_38 = arith.constant 0 : index
    %51 = vector.load %arg6[%c768_37, %c0_38] : memref<1024x128xbf16, #tpu.memory_space<vmem>>, vector<256x128xbf16>
    %cst_39 = arith.constant dense<0.000000e+00> : vector<16x128xf32>
    %52 = tpu.matmul %50, %51, %cst_39 {dimension_numbers = #tpu.dot_dimension_numbers<[1], [0], [0], [1], [0, 0, 1, 1], [], []>} : vector<16x256xbf16>, vector<256x128xbf16>, vector<16x128xf32> -> vector<16x128xf32>
    %53 = arith.addf %42, %52 : vector<16x128xf32>
    %c0_40 = arith.constant 0 : index
    %c0_41 = arith.constant 0 : index
    %54 = vector.load %arg7[%c0_40, %c0_41] : memref<1x128xf32, #tpu.memory_space<vmem>>, vector<1x128xf32>
    %55 = vector.broadcast %54 : vector<1x128xf32> to vector<16x128xf32>
    %56 = arith.addf %53, %55 : vector<16x128xf32>
    %cst_42 = arith.constant 0.000000e+00 : f32
    %57 = vector.broadcast %cst_42 : f32 to vector<16x128xf32>
    %58 = arith.maximumf %56, %57 : vector<16x128xf32>
    %59 = arith.truncf %58 : vector<16x128xf32> to vector<16x128xbf16>
    %c0_43 = arith.constant 0 : index
    %c0_44 = arith.constant 0 : index
    %60 = vector.load %arg8[%c0_43, %c0_44] : memref<128x128xbf16, #tpu.memory_space<vmem>>, vector<128x128xbf16>
    %cst_45 = arith.constant dense<0.000000e+00> : vector<16x128xf32>
    %61 = tpu.matmul %59, %60, %cst_45 {dimension_numbers = #tpu.dot_dimension_numbers<[1], [0], [0], [1], [0, 0, 1, 1], [], []>} : vector<16x128xbf16>, vector<128x128xbf16>, vector<16x128xf32> -> vector<16x128xf32>
    %c0_46 = arith.constant 0 : index
    %c0_47 = arith.constant 0 : index
    %62 = vector.load %arg9[%c0_46, %c0_47] : memref<1x128xf32, #tpu.memory_space<vmem>>, vector<1x128xf32>
    %63 = vector.broadcast %62 : vector<1x128xf32> to vector<16x128xf32>
    %64 = arith.addf %61, %63 : vector<16x128xf32>
    %cst_48 = arith.constant 0.000000e+00 : f32
    %65 = vector.broadcast %cst_48 : f32 to vector<16x128xf32>
    %66 = arith.maximumf %64, %65 : vector<16x128xf32>
    %67 = arith.truncf %66 : vector<16x128xf32> to vector<16x128xbf16>
    %c0_49 = arith.constant 0 : index
    %c0_50 = arith.constant 0 : index
    %68 = vector.load %arg10[%c0_49, %c0_50] : memref<128x128xbf16, #tpu.memory_space<vmem>>, vector<128x128xbf16>
    %cst_51 = arith.constant dense<0.000000e+00> : vector<16x128xf32>
    %69 = tpu.matmul %67, %68, %cst_51 {dimension_numbers = #tpu.dot_dimension_numbers<[1], [0], [0], [1], [0, 0, 1, 1], [], []>} : vector<16x128xbf16>, vector<128x128xbf16>, vector<16x128xf32> -> vector<16x128xf32>
    %c0_52 = arith.constant 0 : index
    %c0_53 = arith.constant 0 : index
    %70 = vector.load %arg11[%c0_52, %c0_53] : memref<1x128xf32, #tpu.memory_space<vmem>>, vector<1x128xf32>
    %71 = vector.broadcast %70 : vector<1x128xf32> to vector<16x128xf32>
    %72 = arith.addf %69, %71 : vector<16x128xf32>
    %cst_54 = arith.constant 0.000000e+00 : f32
    %73 = vector.broadcast %cst_54 : f32 to vector<16x128xf32>
    %74 = arith.maximumf %72, %73 : vector<16x128xf32>
    %75 = arith.truncf %74 : vector<16x128xf32> to vector<16x128xbf16>
    %c0_55 = arith.constant 0 : index
    %c0_56 = arith.constant 0 : index
    %76 = vector.load %arg12[%c0_55, %c0_56] : memref<128x128xbf16, #tpu.memory_space<vmem>>, vector<128x128xbf16>
    %cst_57 = arith.constant dense<0.000000e+00> : vector<16x128xf32>
    %77 = tpu.matmul %75, %76, %cst_57 {dimension_numbers = #tpu.dot_dimension_numbers<[1], [0], [0], [1], [0, 0, 1, 1], [], []>} : vector<16x128xbf16>, vector<128x128xbf16>, vector<16x128xf32> -> vector<16x128xf32>
    %c0_58 = arith.constant 0 : index
    %c0_59 = arith.constant 0 : index
    %78 = vector.load %arg13[%c0_58, %c0_59] : memref<1x128xf32, #tpu.memory_space<vmem>>, vector<1x128xf32>
    %79 = vector.broadcast %78 : vector<1x128xf32> to vector<16x128xf32>
    %80 = arith.addf %77, %79 : vector<16x128xf32>
    %cst_60 = arith.constant 0.000000e+00 : f32
    %81 = vector.broadcast %cst_60 : f32 to vector<16x128xf32>
    %82 = arith.subf %81, %80 : vector<16x128xf32>
    %83 = math.exp %82 : vector<16x128xf32>
    %cst_61 = arith.constant 1.000000e+00 : f32
    %84 = vector.broadcast %cst_61 : f32 to vector<16x128xf32>
    %85 = arith.addf %84, %83 : vector<16x128xf32>
    %86 = tpu.reciprocal %85 {approx = true} : vector<16x128xf32> -> vector<16x128xf32>
    %c0_62 = arith.constant 0 : index
    %c0_63 = arith.constant 0 : index
    %87 = vector.load %arg14[%c0_62, %c0_63] : memref<16x128xf32, #tpu.memory_space<vmem>>, vector<16x128xf32>
    tpu.vector_store %arg14[%c0_62, %c0_63], %86 {strides = array<i32>} : memref<16x128xf32, #tpu.memory_space<vmem>>, vector<16x128xf32>,
    return
  }
  func.func @transform_0(%arg0: i32) -> (i32, i32) {
    %c0_i32 = arith.constant 0 : i32
    %c0_i32_0 = arith.constant 0 : i32
    return %arg0, %c0_i32 : i32, i32
  }
  func.func @transform_1(%arg0: i32) -> (i32, i32) {
    %c0_i32 = arith.constant 0 : i32
    %c0_i32_0 = arith.constant 0 : i32
    %c0_i32_1 = arith.constant 0 : i32
    return %c0_i32, %c0_i32_0 : i32, i32
  }
  func.func @transform_2(%arg0: i32) -> (i32, i32) {
    %c0_i32 = arith.constant 0 : i32
    %c0_i32_0 = arith.constant 0 : i32
    %c0_i32_1 = arith.constant 0 : i32
    return %c0_i32, %c0_i32_0 : i32, i32
  }
  func.func @transform_3(%arg0: i32) -> (i32, i32) {
    %c0_i32 = arith.constant 0 : i32
    %c0_i32_0 = arith.constant 0 : i32
    %c0_i32_1 = arith.constant 0 : i32
    return %c0_i32, %c0_i32_0 : i32, i32
  }
  func.func @transform_4(%arg0: i32) -> (i32, i32) {
    %c0_i32 = arith.constant 0 : i32
    %c0_i32_0 = arith.constant 0 : i32
    %c0_i32_1 = arith.constant 0 : i32
    return %c0_i32, %c0_i32_0 : i32, i32
  }
  func.func @transform_5(%arg0: i32) -> (i32, i32) {
    %c0_i32 = arith.constant 0 : i32
    %c0_i32_0 = arith.constant 0 : i32
    %c0_i32_1 = arith.constant 0 : i32
    return %c0_i32, %c0_i32_0 : i32, i32
  }
  func.func @transform_6(%arg0: i32) -> (i32, i32) {
    %c0_i32 = arith.constant 0 : i32
    %c0_i32_0 = arith.constant 0 : i32
    %c0_i32_1 = arith.constant 0 : i32
    return %c0_i32, %c0_i32_0 : i32, i32
  }
  func.func @transform_7(%arg0: i32) -> (i32, i32) {
    %c0_i32 = arith.constant 0 : i32
    %c0_i32_0 = arith.constant 0 : i32
    %c0_i32_1 = arith.constant 0 : i32
    return %c0_i32, %c0_i32_0 : i32, i32
  }
  func.func @transform_8(%arg0: i32) -> (i32, i32) {
    %c0_i32 = arith.constant 0 : i32
    %c0_i32_0 = arith.constant 0 : i32
    %c0_i32_1 = arith.constant 0 : i32
    return %c0_i32, %c0_i32_0 : i32, i32
  }
  func.func @transform_9(%arg0: i32) -> (i32, i32) {
    %c0_i32 = arith.constant 0 : i32
    %c0_i32_0 = arith.constant 0 : i32
    %c0_i32_1 = arith.constant 0 : i32
    return %c0_i32, %c0_i32_0 : i32, i32
  }
  func.func @transform_10(%arg0: i32) -> (i32, i32) {
    %c0_i32 = arith.constant 0 : i32
    %c0_i32_0 = arith.constant 0 : i32
    %c0_i32_1 = arith.constant 0 : i32
    return %c0_i32, %c0_i32_0 : i32, i32
  }
  func.func @transform_11(%arg0: i32) -> (i32, i32) {
    %c0_i32 = arith.constant 0 : i32
    %c0_i32_0 = arith.constant 0 : i32
    %c0_i32_1 = arith.constant 0 : i32
    return %c0_i32, %c0_i32_0 : i32, i32
  }
  func.func @transform_12(%arg0: i32) -> (i32, i32) {
    %c0_i32 = arith.constant 0 : i32
    %c0_i32_0 = arith.constant 0 : i32
    %c0_i32_1 = arith.constant 0 : i32
    return %c0_i32, %c0_i32_0 : i32, i32
  }
  func.func @transform_13(%arg0: i32) -> (i32, i32) {
    %c0_i32 = arith.constant 0 : i32
    %c0_i32_0 = arith.constant 0 : i32
    return %arg0, %c0_i32 : i32, i32
  }
}

</mosaic_0001>

<llo_original>
// kernel: _lambda_.1
$region0: #{_lambda_.1}
  #allocation0 [shape = 'u32[]', space=smem, size = 0x4, offset = 0x4, fixed_abs, tag = 'smem constant byte address 0x4 - core index']
  #allocation1 [shape = 'u32[144,128]{1,0:T(1,128)}', space=vmem, size = 0x12000, scoped, tag = 'internal scratch']
  %s0 = inlined_call_operand.vmem [shape: bf16[16,128], index: 0, kind: input, shape index: {}]
  %s1 = inlined_call_operand.hbm [shape: bf16[128,128], index: 1, kind: input, shape index: {}]
  %s2 = inlined_call_operand.vmem [shape: f32[1,128], index: 2, kind: input, shape index: {}]
  %s3 = inlined_call_operand.hbm [shape: bf16[128,1024], index: 3, kind: input, shape index: {}]
  %s4 = inlined_call_operand.vmem [shape: f32[1,1024], index: 4, kind: input, shape index: {}]
  %s5 = inlined_call_operand.hbm [shape: bf16[1024,128], index: 5, kind: input, shape index: {}]
  %s6 = inlined_call_operand.vmem [shape: f32[1,128], index: 6, kind: input, shape index: {}]
  %s7 = inlined_call_operand.hbm [shape: bf16[128,128], index: 7, kind: input, shape index: {}]
  %s8 = inlined_call_operand.vmem [shape: f32[1,128], index: 8, kind: input, shape index: {}]
  %s9 = inlined_call_operand.hbm [shape: bf16[128,128], index: 9, kind: input, shape index: {}]
  %s10 = inlined_call_operand.vmem [shape: f32[1,128], index: 10, kind: input, shape index: {}]
  %s11 = inlined_call_operand.hbm [shape: bf16[128,128], index: 11, kind: input, shape index: {}]
  %s12 = inlined_call_operand.vmem [shape: f32[1,128], index: 12, kind: input, shape index: {}]
  %s13 = inlined_call_operand.vmem [shape: f32[16,128], index: 13, kind: output, shape index: {}]
  %s14 = sld [smem:[#allocation0]]
  $region86: #{_lambda_.1} parent=0
    _
  %s16 = ssub.s32 1, %s14
  %s17 = scalar_select 0, %s16, %s14
  $region1: #{_lambda_.1} parent=0
    #allocation2 [shape = 'u8[32768]{0}', space=vmem, size = 0x8000, scoped, tag = 'input window, operand 1, single buffered']
    #allocation3 [shape = 's32[1]{0}', space=sflag, size = 0x4, scoped, tag = 'scoped memory for _lambda_.1']
    #allocation4 [shape = 'u8[262144]{0}', space=vmem, size = 0x40000, scoped, tag = 'input window, operand 3, single buffered']
    #allocation5 [shape = 's32[1]{0}', space=sflag, size = 0x4, scoped, tag = 'scoped memory for _lambda_.1']
    #allocation6 [shape = 'u8[262144]{0}', space=vmem, size = 0x40000, scoped, tag = 'input window, operand 5, single buffered']
    #allocation7 [shape = 'u8[32768]{0}', space=vmem, size = 0x8000, scoped, tag = 'input window, operand 7, single buffered']
    #allocation8 [shape = 's32[1]{0}', space=sflag, size = 0x4, scoped, tag = 'scoped memory for _lambda_.1']
    #allocation9 [shape = 'u8[32768]{0}', space=vmem, size = 0x8000, scoped, tag = 'input window, operand 9, single buffered']
    #allocation10 [shape = 'u8[32768]{0}', space=vmem, size = 0x8000, scoped, tag = 'input window, operand 11, single buffered']
    #allocation11 [shape = 's32[1]{0}', space=sflag, size = 0x4, scoped, tag = 'scoped memory for _lambda_.1']
    %18 = vsyncpa [#allocation3], 0
    %19 = vsyncpa [#allocation5], 0
    %20 = vsyncpa [#allocation8], 0
    %21 = vsyncpa [#allocation11], 0
    // Predicated region
    $region2: #{_lambda_.1} parent=1 // pred_check
      _
    $region3: #{_lambda_.1} parent=1 // pred_check_branch
      %23 = sbr.rel (0) target = $region5
    $region4: #{_lambda_.1} parent=1 // pred_region
      _
    $region5: #{_lambda_.1} parent=1 // pred_fallthru
      _
    // Predicated region
    $region6: #{_lambda_.1} parent=1 // pred_check
      _
    $region7: #{_lambda_.1} parent=1 // pred_check_branch
      %25 = sbr.rel (0) target = $region9
    $region8: #{_lambda_.1} parent=1 // pred_region
      %s27 = ssub.s32 1024, 1024
      %28 = vsyncadd [#allocation3], %s27
      %s29 = sshll.u32 [#allocation2], 4
      %s30 = int_to_ptr.vmem [resolvable:$true] %s29
      %35 = dma.hbm_to_vmem [thread:$0]  %s1, 1024, %s30, [#allocation3], 64, 64, 4
    $region9: #{_lambda_.1} parent=1 // pred_fallthru
      _
    // Predicated region
    $region10: #{_lambda_.1} parent=1 // pred_check
      _
    $region11: #{_lambda_.1} parent=1 // pred_check_branch
      %37 = sbr.rel (0) target = $region13
    $region12: #{_lambda_.1} parent=1 // pred_region
      _
    $region13: #{_lambda_.1} parent=1 // pred_fallthru
      _
    // Predicated region
    $region14: #{_lambda_.1} parent=1 // pred_check
      _
    $region15: #{_lambda_.1} parent=1 // pred_check_branch
      %39 = sbr.rel (0) target = $region17
    $region16: #{_lambda_.1} parent=1 // pred_region
      %s41 = ssub.s32 8192, 8192
      %42 = vsyncadd [#allocation5], %s41
      %s43 = sshll.u32 [#allocation4], 4
      %s44 = int_to_ptr.vmem [resolvable:$true] %s43
      %49 = dma.hbm_to_vmem [thread:$0]  %s3, 8192, %s44, [#allocation5], 512, 512, 32
    $region17: #{_lambda_.1} parent=1 // pred_fallthru
      _
    // Predicated region
    $region18: #{_lambda_.1} parent=1 // pred_check
      _
    $region19: #{_lambda_.1} parent=1 // pred_check_branch
      %51 = sbr.rel (0) target = $region21
    $region20: #{_lambda_.1} parent=1 // pred_region
      _
    $region21: #{_lambda_.1} parent=1 // pred_fallthru
      _
    // Predicated region
    $region22: #{_lambda_.1} parent=1 // pred_check
      _
    $region23: #{_lambda_.1} parent=1 // pred_check_branch
      %53 = sbr.rel (0) target = $region25
    $region24: #{_lambda_.1} parent=1 // pred_region
      %s55 = ssub.s32 8192, 8192
      %56 = vsyncadd [#allocation5], %s55
      %s57 = sshll.u32 [#allocation6], 4
      %s58 = int_to_ptr.vmem [resolvable:$true] %s57
      %63 = dma.hbm_to_vmem [thread:$0]  %s5, 8192, %s58, [#allocation5], 64, 64, 4
    $region25: #{_lambda_.1} parent=1 // pred_fallthru
      _
    // Predicated region
    $region26: #{_lambda_.1} parent=1 // pred_check
      _
    $region27: #{_lambda_.1} parent=1 // pred_check_branch
      %65 = sbr.rel (0) target = $region29
    $region28: #{_lambda_.1} parent=1 // pred_region
      _
    $region29: #{_lambda_.1} parent=1 // pred_fallthru
      _
    // Predicated region
    $region30: #{_lambda_.1} parent=1 // pred_check
      _
    $region31: #{_lambda_.1} parent=1 // pred_check_branch
      %67 = sbr.rel (0) target = $region33
    $region32: #{_lambda_.1} parent=1 // pred_region
      %s69 = ssub.s32 1024, 1024
      %70 = vsyncadd [#allocation8], %s69
      %s71 = sshll.u32 [#allocation7], 4
      %s72 = int_to_ptr.vmem [resolvable:$true] %s71
      %77 = dma.hbm_to_vmem [thread:$0]  %s7, 1024, %s72, [#allocation8], 64, 64, 4
    $region33: #{_lambda_.1} parent=1 // pred_fallthru
      _
    // Predicated region
    $region34: #{_lambda_.1} parent=1 // pred_check
      _
    $region35: #{_lambda_.1} parent=1 // pred_check_branch
      %79 = sbr.rel (0) target = $region37
    $region36: #{_lambda_.1} parent=1 // pred_region
      _
    $region37: #{_lambda_.1} parent=1 // pred_fallthru
      _
    // Predicated region
    $region38: #{_lambda_.1} parent=1 // pred_check
      _
    $region39: #{_lambda_.1} parent=1 // pred_check_branch
      %81 = sbr.rel (0) target = $region41
    $region40: #{_lambda_.1} parent=1 // pred_region
      %s83 = ssub.s32 1024, 1024
      %84 = vsyncadd [#allocation8], %s83
      %s85 = sshll.u32 [#allocation9], 4
      %s86 = int_to_ptr.vmem [resolvable:$true] %s85
      %91 = dma.hbm_to_vmem [thread:$0]  %s9, 1024, %s86, [#allocation8], 64, 64, 4
    $region41: #{_lambda_.1} parent=1 // pred_fallthru
      _
    // Predicated region
    $region42: #{_lambda_.1} parent=1 // pred_check
      _
    $region43: #{_lambda_.1} parent=1 // pred_check_branch
      %93 = sbr.rel (0) target = $region45
    $region44: #{_lambda_.1} parent=1 // pred_region
      _
    $region45: #{_lambda_.1} parent=1 // pred_fallthru
      _
    // Predicated region
    $region46: #{_lambda_.1} parent=1 // pred_check
      _
    $region47: #{_lambda_.1} parent=1 // pred_check_branch
      %95 = sbr.rel (0) target = $region49
    $region48: #{_lambda_.1} parent=1 // pred_region
      %s97 = ssub.s32 1024, 1024
      %98 = vsyncadd [#allocation11], %s97
      %s99 = sshll.u32 [#allocation10], 4
      %s100 = int_to_ptr.vmem [resolvable:$true] %s99
      %105 = dma.hbm_to_vmem [thread:$0]  %s11, 1024, %s100, [#allocation11], 64, 64, 4
    $region49: #{_lambda_.1} parent=1 // pred_fallthru
      _
    // Predicated region
    $region50: #{_lambda_.1} parent=1 // pred_check
      _
    $region51: #{_lambda_.1} parent=1 // pred_check_branch
      %107 = sbr.rel (0) target = $region53
    $region52: #{_lambda_.1} parent=1 // pred_region
      _
    $region53: #{_lambda_.1} parent=1 // pred_fallthru
      _
    // Predicated region
    $region54: #{_lambda_.1} parent=1 // pred_check
      _
    $region55: #{_lambda_.1} parent=1 // pred_check_branch
      %109 = sbr.rel (0) target = $region57
    $region56: #{_lambda_.1} parent=1 // pred_region
      %110 = dma.done [#allocation3], 1024
    $region57: #{_lambda_.1} parent=1 // pred_fallthru
      _
    // Predicated region
    $region58: #{_lambda_.1} parent=1 // pred_check
      _
    $region59: #{_lambda_.1} parent=1 // pred_check_branch
      %112 = sbr.rel (0) target = $region61
    $region60: #{_lambda_.1} parent=1 // pred_region
      %113 = dma.done [#allocation5], 8192
    $region61: #{_lambda_.1} parent=1 // pred_fallthru
      _
    // Predicated region
    $region62: #{_lambda_.1} parent=1 // pred_check
      _
    $region63: #{_lambda_.1} parent=1 // pred_check_branch
      %115 = sbr.rel (0) target = $region65
    $region64: #{_lambda_.1} parent=1 // pred_region
      %116 = dma.done [#allocation5], 8192
    $region65: #{_lambda_.1} parent=1 // pred_fallthru
      _
    // Predicated region
    $region66: #{_lambda_.1} parent=1 // pred_check
      _
    $region67: #{_lambda_.1} parent=1 // pred_check_branch
      %118 = sbr.rel (0) target = $region69
    $region68: #{_lambda_.1} parent=1 // pred_region
      %119 = dma.done [#allocation8], 1024
    $region69: #{_lambda_.1} parent=1 // pred_fallthru
      _
    // Predicated region
    $region70: #{_lambda_.1} parent=1 // pred_check
      _
    $region71: #{_lambda_.1} parent=1 // pred_check_branch
      %121 = sbr.rel (0) target = $region73
    $region72: #{_lambda_.1} parent=1 // pred_region
      %122 = dma.done [#allocation8], 1024
    $region73: #{_lambda_.1} parent=1 // pred_fallthru
      _
    // Predicated region
    $region74: #{_lambda_.1} parent=1 // pred_check
      _
    $region75: #{_lambda_.1} parent=1 // pred_check_branch
      %124 = sbr.rel (0) target = $region77
    $region76: #{_lambda_.1} parent=1 // pred_region
      %125 = dma.done [#allocation11], 1024
    $region77: #{_lambda_.1} parent=1 // pred_fallthru
      _
    %v127 = vld [vmem:[%s0] sm:$0xf]
    %v128 = vld [vmem:[%s0 + $0x4] sm:$0xf]
    %v129 = vld [vmem:[#allocation2] sm:$0xf]
    %v130 = vld [vmem:[#allocation2 + $0x4] sm:$0xf]
    %v131 = vld [vmem:[#allocation2 + $0x8] sm:$0xf]
    %v132 = vld [vmem:[#allocation2 + $0xc] sm:$0xf]
    %v133 = vld [vmem:[#allocation2 + $0x10] sm:$0xf]
    %v134 = vld [vmem:[#allocation2 + $0x14] sm:$0xf]
    %v135 = vld [vmem:[#allocation2 + $0x18] sm:$0xf]
    %v136 = vld [vmem:[#allocation2 + $0x1c] sm:$0xf]
    %v137 = vld [vmem:[#allocation2 + $0x20] sm:$0xf]
    %v138 = vld [vmem:[#allocation2 + $0x24] sm:$0xf]
    %v139 = vld [vmem:[#allocation2 + $0x28] sm:$0xf]
    %v140 = vld [vmem:[#allocation2 + $0x2c] sm:$0xf]
    %v141 = vld [vmem:[#allocation2 + $0x30] sm:$0xf]
    %v142 = vld [vmem:[#allocation2 + $0x34] sm:$0xf]
    %v143 = vld [vmem:[#allocation2 + $0x38] sm:$0xf]
    %v144 = vld [vmem:[#allocation2 + $0x3c] sm:$0xf]
    %v145 = vld [vmem:[%s2] sm:$0x1]
    %v147 = vlaneseq
    %v148 = vshrl.u32 %v147, 7
    %v149 = vsub.s32 0, %v148
    %v150 = vrot.slane %v145, %v149
    %v154 = vunpack.c.l.b16 %v127
    %v155 = vunpack.c.l.b16 %v128
    %v156 = vpack.c.b16 %v155, %v154
    %v174 = vunpack.c.l.b16 %v129
    %v175 = vunpack.c.l.b16 %v130
    %v176 = vunpack.c.l.b16 %v131
    %v177 = vunpack.c.l.b16 %v132
    %v178 = vunpack.c.l.b16 %v133
    %v179 = vunpack.c.l.b16 %v134
    %v180 = vunpack.c.l.b16 %v135
    %v181 = vunpack.c.l.b16 %v136
    %v182 = vunpack.c.l.b16 %v137
    %v183 = vunpack.c.l.b16 %v138
    %v184 = vunpack.c.l.b16 %v139
    %v185 = vunpack.c.l.b16 %v140
    %v186 = vunpack.c.l.b16 %v141
    %v187 = vunpack.c.l.b16 %v142
    %v188 = vunpack.c.l.b16 %v143
    %v189 = vunpack.c.l.b16 %v144
    %v190 = vpack.c.b16 %v175, %v174
    %v191 = vpack.c.b16 %v177, %v176
    %v192 = vpack.c.b16 %v179, %v178
    %v193 = vpack.c.b16 %v181, %v180
    %v194 = vpack.c.b16 %v183, %v182
    %v195 = vpack.c.b16 %v185, %v184
    %v196 = vpack.c.b16 %v187, %v186
    %v197 = vpack.c.b16 %v189, %v188
    %206 = vmatprep.subr.bf16.mxu0 0
    %207 = vmatpush1.bf16.msra.mxu0 %v190
    %208 = vmatprep.subr.bf16.mxu0 0
    %209 = vmatpush1.bf16.msra.mxu0 %v191
    %210 = vmatprep.subr.bf16.mxu0 0
    %211 = vmatpush1.bf16.msra.mxu0 %v192
    %212 = vmatprep.subr.bf16.mxu0 0
    %213 = vmatpush1.bf16.msra.mxu0 %v193
    %214 = vmatprep.subr.bf16.mxu0 0
    %215 = vmatpush1.bf16.msra.mxu0 %v194
    %216 = vmatprep.subr.bf16.mxu0 0
    %217 = vmatpush1.bf16.msra.mxu0 %v195
    %218 = vmatprep.subr.bf16.mxu0 0
    %219 = vmatpush1.bf16.msra.mxu0 %v196
    %220 = vmatprep.subr.bf16.mxu0 0
    %221 = vmatpush1.bf16.msra.mxu0 %v197
    %222 = vmatprep.subr.bf16.mxu0 0
    %223 = vmatpush1.bf16.msra.mxu0 0
    %224 = vmatprep.subr.bf16.mxu0 0
    %225 = vmatpush1.bf16.msra.mxu0 0
    %226 = vmatprep.subr.bf16.mxu0 0
    %227 = vmatpush1.bf16.msra.mxu0 0
    %228 = vmatprep.subr.bf16.mxu0 0
    %229 = vmatpush1.bf16.msra.mxu0 0
    %230 = vmatprep.subr.bf16.mxu0 0
    %231 = vmatpush1.bf16.msra.mxu0 0
    %232 = vmatprep.subr.bf16.mxu0 0
    %233 = vmatpush1.bf16.msra.mxu0 0
    %234 = vmatprep.subr.bf16.mxu0 0
    %235 = vmatpush1.bf16.msra.mxu0 0
    %236 = vmatprep.subr.bf16.mxu0 0
    %237 = vmatpush1.bf16.msra.mxu0 0
    %238 = vmatprep.mubr.bf16.mxu0 0
    %239 = vmatmul.mubr.bf16.gmra.mrb[0].mxu0 %v156
    %v240 = vpop.f32.mrb[0].mxu0
    %v241 = vadd.f32 %v150, %v240
    %v242 = vpop.f32.mrb[0].mxu0
    %v243 = vpop.f32.mrb[0].mxu0
    %v244 = vadd.f32 %v150, %v243
    %v245 = vpop.f32.mrb[0].mxu0
    %246 = vdwg.mxu0
    %v247 = vmax.f32 %v241, 0.0
    %v248 = vmax.f32 %v244, 0.0
    %v249 = vpack.c.bf16 %v248, %v247
    %v250 = vld [vmem:[#allocation4] sm:$0xff]
    %v251 = vld [vmem:[#allocation4 + $0x20] sm:$0xff]
    %v252 = vld [vmem:[#allocation4 + $0x40] sm:$0xff]
    %v253 = vld [vmem:[#allocation4 + $0x60] sm:$0xff]
    %v254 = vld [vmem:[#allocation4 + $0x80] sm:$0xff]
    %v255 = vld [vmem:[#allocation4 + $0xa0] sm:$0xff]
    %v256 = vld [vmem:[#allocation4 + $0xc0] sm:$0xff]
    %v257 = vld [vmem:[#allocation4 + $0xe0] sm:$0xff]
    %v258 = vld [vmem:[#allocation4 + $0x100] sm:$0xff]
    %v259 = vld [vmem:[#allocation4 + $0x120] sm:$0xff]
    %v260 = vld [vmem:[#allocation4 + $0x140] sm:$0xff]
    %v261 = vld [vmem:[#allocation4 + $0x160] sm:$0xff]
    %v262 = vld [vmem:[#allocation4 + $0x180] sm:$0xff]
    %v263 = vld [vmem:[#allocation4 + $0x1a0] sm:$0xff]
    %v264 = vld [vmem:[#allocation4 + $0x1c0] sm:$0xff]
    %v265 = vld [vmem:[#allocation4 + $0x1e0] sm:$0xff]
    %v266 = vld [vmem:[%s4] sm:$0x3]
    %v268 = vlaneseq
    %v269 = vshrl.u32 %v268, 7
    %v270 = vsub.s32 0, %v269
    %v271 = vrot.slane %v266, %v270
    %v272 = vlaneseq
    %v273 = vshrl.u32 %v272, 7
    %v274 = vsub.s32 1, %v273
    %v275 = vrot.slane %v266, %v274
    %v294 = vunpack.c.l.b16 %v250
    %v295 = vunpack.c.h.b16 %v250
    %v296 = vunpack.c.l.b16 %v251
    %v297 = vunpack.c.h.b16 %v251
    %v298 = vunpack.c.l.b16 %v252
    %v299 = vunpack.c.h.b16 %v252
    %v300 = vunpack.c.l.b16 %v253
    %v301 = vunpack.c.h.b16 %v253
    %v302 = vunpack.c.l.b16 %v254
    %v303 = vunpack.c.h.b16 %v254
    %v304 = vunpack.c.l.b16 %v255
    %v305 = vunpack.c.h.b16 %v255
    %v306 = vunpack.c.l.b16 %v256
    %v307 = vunpack.c.h.b16 %v256
    %v308 = vunpack.c.l.b16 %v257
    %v309 = vunpack.c.h.b16 %v257
    %v310 = vunpack.c.l.b16 %v258
    %v311 = vunpack.c.h.b16 %v258
    %v312 = vunpack.c.l.b16 %v259
    %v313 = vunpack.c.h.b16 %v259
    %v314 = vunpack.c.l.b16 %v260
    %v315 = vunpack.c.h.b16 %v260
    %v316 = vunpack.c.l.b16 %v261
    %v317 = vunpack.c.h.b16 %v261
    %v318 = vunpack.c.l.b16 %v262
    %v319 = vunpack.c.h.b16 %v262
    %v320 = vunpack.c.l.b16 %v263
    %v321 = vunpack.c.h.b16 %v263
    %v322 = vunpack.c.l.b16 %v264
    %v323 = vunpack.c.h.b16 %v264
    %v324 = vunpack.c.l.b16 %v265
    %v325 = vunpack.c.h.b16 %v265
    %v326 = vpack.c.b16 %v296, %v294
    %v327 = vpack.c.b16 %v297, %v295
    %v328 = vpack.c.b16 %v300, %v298
    %v329 = vpack.c.b16 %v301, %v299
    %v330 = vpack.c.b16 %v304, %v302
    %v331 = vpack.c.b16 %v305, %v303
    %v332 = vpack.c.b16 %v308, %v306
    %v333 = vpack.c.b16 %v309, %v307
    %v334 = vpack.c.b16 %v312, %v310
    %v335 = vpack.c.b16 %v313, %v311
    %v336 = vpack.c.b16 %v316, %v314
    %v337 = vpack.c.b16 %v317, %v315
    %v338 = vpack.c.b16 %v320, %v318
    %v339 = vpack.c.b16 %v321, %v319
    %v340 = vpack.c.b16 %v324, %v322
    %v341 = vpack.c.b16 %v325, %v323
    %358 = vmatprep.subr.bf16.mxu0 %v327
    %359 = vmatpush1.bf16.msra.mxu0 %v326
    %360 = vmatprep.subr.bf16.mxu0 %v329
    %361 = vmatpush1.bf16.msra.mxu0 %v328
    %362 = vmatprep.subr.bf16.mxu0 %v331
    %363 = vmatpush1.bf16.msra.mxu0 %v330
    %364 = vmatprep.subr.bf16.mxu0 %v333
    %365 = vmatpush1.bf16.msra.mxu0 %v332
    %366 = vmatprep.subr.bf16.mxu0 %v335
    %367 = vmatpush1.bf16.msra.mxu0 %v334
    %368 = vmatprep.subr.bf16.mxu0 %v337
    %369 = vmatpush1.bf16.msra.mxu0 %v336
    %370 = vmatprep.subr.bf16.mxu0 %v339
    %371 = vmatpush1.bf16.msra.mxu0 %v338
    %372 = vmatprep.subr.bf16.mxu0 %v341
    %373 = vmatpush1.bf16.msra.mxu0 %v340
    %374 = vmatprep.subr.bf16.mxu0 0
    %375 = vmatpush1.bf16.msra.mxu0 0
    %376 = vmatprep.subr.bf16.mxu0 0
    %377 = vmatpush1.bf16.msra.mxu0 0
    %378 = vmatprep.subr.bf16.mxu0 0
    %379 = vmatpush1.bf16.msra.mxu0 0
    %380 = vmatprep.subr.bf16.mxu0 0
    %381 = vmatpush1.bf16.msra.mxu0 0
    %382 = vmatprep.subr.bf16.mxu0 0
    %383 = vmatpush1.bf16.msra.mxu0 0
    %384 = vmatprep.subr.bf16.mxu0 0
    %385 = vmatpush1.bf16.msra.mxu0 0
    %386 = vmatprep.subr.bf16.mxu0 0
    %387 = vmatpush1.bf16.msra.mxu0 0
    %388 = vmatprep.subr.bf16.mxu0 0
    %389 = vmatpush1.bf16.msra.mxu0 0
    %390 = vmatprep.mubr.bf16.mxu0 0
    %391 = vmatmul.mubr.bf16.gmra.mrb[0].mxu0 %v249
    %v392 = vpop.f32.mrb[0].mxu0
    %v393 = vadd.f32 %v271, %v392
    %v394 = vpop.f32.mrb[0].mxu0
    %v395 = vadd.f32 %v275, %v394
    %v396 = vpop.f32.mrb[0].mxu0
    %v397 = vadd.f32 %v271, %v396
    %v398 = vpop.f32.mrb[0].mxu0
    %v399 = vadd.f32 %v275, %v398
    %400 = vdwg.mxu0
    %v401 = vmax.f32 %v393, 0.0
    %v402 = vmax.f32 %v395, 0.0
    %v403 = vmax.f32 %v397, 0.0
    %v404 = vmax.f32 %v399, 0.0
    %v405 = vpack.c.bf16 %v403, %v401
    %v406 = vpack.c.bf16 %v404, %v402
    %v407 = vld [vmem:[#allocation6] sm:$0xf]
    %v408 = vld [vmem:[#allocation6 + $0x4] sm:$0xf]
    %v409 = vld [vmem:[#allocation6 + $0x8] sm:$0xf]
    %v410 = vld [vmem:[#allocation6 + $0xc] sm:$0xf]
    %v411 = vld [vmem:[#allocation6 + $0x10] sm:$0xf]
    %v412 = vld [vmem:[#allocation6 + $0x14] sm:$0xf]
    %v413 = vld [vmem:[#allocation6 + $0x18] sm:$0xf]
    %v414 = vld [vmem:[#allocation6 + $0x1c] sm:$0xf]
    %v415 = vld [vmem:[#allocation6 + $0x20] sm:$0xf]
    %v416 = vld [vmem:[#allocation6 + $0x24] sm:$0xf]
    %v417 = vld [vmem:[#allocation6 + $0x28] sm:$0xf]
    %v418 = vld [vmem:[#allocation6 + $0x2c] sm:$0xf]
    %v419 = vld [vmem:[#allocation6 + $0x30] sm:$0xf]
    %v420 = vld [vmem:[#allocation6 + $0x34] sm:$0xf]
    %v421 = vld [vmem:[#allocation6 + $0x38] sm:$0xf]
    %v422 = vld [vmem:[#allocation6 + $0x3c] sm:$0xf]
    %v423 = vld [vmem:[#allocation6 + $0x40] sm:$0xf]
    %v424 = vld [vmem:[#allocation6 + $0x44] sm:$0xf]
    %v425 = vld [vmem:[#allocation6 + $0x48] sm:$0xf]
    %v426 = vld [vmem:[#allocation6 + $0x4c] sm:$0xf]
    %v427 = vld [vmem:[#allocation6 + $0x50] sm:$0xf]
    %v428 = vld [vmem:[#allocation6 + $0x54] sm:$0xf]
    %v429 = vld [vmem:[#allocation6 + $0x58] sm:$0xf]
    %v430 = vld [vmem:[#allocation6 + $0x5c] sm:$0xf]
    %v431 = vld [vmem:[#allocation6 + $0x60] sm:$0xf]
    %v432 = vld [vmem:[#allocation6 + $0x64] sm:$0xf]
    %v433 = vld [vmem:[#allocation6 + $0x68] sm:$0xf]
    %v434 = vld [vmem:[#allocation6 + $0x6c] sm:$0xf]
    %v435 = vld [vmem:[#allocation6 + $0x70] sm:$0xf]
    %v436 = vld [vmem:[#allocation6 + $0x74] sm:$0xf]
    %v437 = vld [vmem:[#allocation6 + $0x78] sm:$0xf]
    %v438 = vld [vmem:[#allocation6 + $0x7c] sm:$0xf]
    %v439 = vld [vmem:[#allocation4 + $0x8] sm:$0xff]
    %v440 = vld [vmem:[#allocation4 + $0x28] sm:$0xff]
    %v441 = vld [vmem:[#allocation4 + $0x48] sm:$0xff]
    %v442 = vld [vmem:[#allocation4 + $0x68] sm:$0xff]
    %v443 = vld [vmem:[#allocation4 + $0x88] sm:$0xff]
    %v444 = vld [vmem:[#allocation4 + $0xa8] sm:$0xff]
    %v445 = vld [vmem:[#allocation4 + $0xc8] sm:$0xff]
    %v446 = vld [vmem:[#allocation4 + $0xe8] sm:$0xff]
    %v447 = vld [vmem:[#allocation4 + $0x108] sm:$0xff]
    %v448 = vld [vmem:[#allocation4 + $0x128] sm:$0xff]
    %v449 = vld [vmem:[#allocation4 + $0x148] sm:$0xff]
    %v450 = vld [vmem:[#allocation4 + $0x168] sm:$0xff]
    %v451 = vld [vmem:[#allocation4 + $0x188] sm:$0xff]
    %v452 = vld [vmem:[#allocation4 + $0x1a8] sm:$0xff]
    %v453 = vld [vmem:[#allocation4 + $0x1c8] sm:$0xff]
    %v454 = vld [vmem:[#allocation4 + $0x1e8] sm:$0xff]
    %v455 = vld [vmem:[%s4 + $0x2] sm:$0x3]
    %v457 = vlaneseq
    %v458 = vshrl.u32 %v457, 7
    %v459 = vsub.s32 0, %v458
    %v460 = vrot.slane %v455, %v459
    %v461 = vlaneseq
    %v462 = vshrl.u32 %v461, 7
    %v463 = vsub.s32 1, %v462
    %v464 = vrot.slane %v455, %v463
    %v483 = vunpack.c.l.b16 %v439
    %v484 = vunpack.c.h.b16 %v439
    %v485 = vunpack.c.l.b16 %v440
    %v486 = vunpack.c.h.b16 %v440
    %v487 = vunpack.c.l.b16 %v441
    %v488 = vunpack.c.h.b16 %v441
    %v489 = vunpack.c.l.b16 %v442
    %v490 = vunpack.c.h.b16 %v442
    %v491 = vunpack.c.l.b16 %v443
    %v492 = vunpack.c.h.b16 %v443
    %v493 = vunpack.c.l.b16 %v444
    %v494 = vunpack.c.h.b16 %v444
    %v495 = vunpack.c.l.b16 %v445
    %v496 = vunpack.c.h.b16 %v445
    %v497 = vunpack.c.l.b16 %v446
    %v498 = vunpack.c.h.b16 %v446
    %v499 = vunpack.c.l.b16 %v447
    %v500 = vunpack.c.h.b16 %v447
    %v501 = vunpack.c.l.b16 %v448
    %v502 = vunpack.c.h.b16 %v448
    %v503 = vunpack.c.l.b16 %v449
    %v504 = vunpack.c.h.b16 %v449
    %v505 = vunpack.c.l.b16 %v450
    %v506 = vunpack.c.h.b16 %v450
    %v507 = vunpack.c.l.b16 %v451
    %v508 = vunpack.c.h.b16 %v451
    %v509 = vunpack.c.l.b16 %v452
    %v510 = vunpack.c.h.b16 %v452
    %v511 = vunpack.c.l.b16 %v453
    %v512 = vunpack.c.h.b16 %v453
    %v513 = vunpack.c.l.b16 %v454
    %v514 = vunpack.c.h.b16 %v454
    %v515 = vpack.c.b16 %v485, %v483
    %v516 = vpack.c.b16 %v486, %v484
    %v517 = vpack.c.b16 %v489, %v487
    %v518 = vpack.c.b16 %v490, %v488
    %v519 = vpack.c.b16 %v493, %v491
    %v520 = vpack.c.b16 %v494, %v492
    %v521 = vpack.c.b16 %v497, %v495
    %v522 = vpack.c.b16 %v498, %v496
    %v523 = vpack.c.b16 %v501, %v499
    %v524 = vpack.c.b16 %v502, %v500
    %v525 = vpack.c.b16 %v505, %v503
    %v526 = vpack.c.b16 %v506, %v504
    %v527 = vpack.c.b16 %v509, %v507
    %v528 = vpack.c.b16 %v510, %v508
    %v529 = vpack.c.b16 %v513, %v511
    %v530 = vpack.c.b16 %v514, %v512
    %547 = vmatprep.subr.bf16.mxu0 %v516
    %548 = vmatpush1.bf16.msra.mxu0 %v515
    %549 = vmatprep.subr.bf16.mxu0 %v518
    %550 = vmatpush1.bf16.msra.mxu0 %v517
    %551 = vmatprep.subr.bf16.mxu0 %v520
    %552 = vmatpush1.bf16.msra.mxu0 %v519
    %553 = vmatprep.subr.bf16.mxu0 %v522
    %554 = vmatpush1.bf16.msra.mxu0 %v521
    %555 = vmatprep.subr.bf16.mxu0 %v524
    %556 = vmatpush1.bf16.msra.mxu0 %v523
    %557 = vmatprep.subr.bf16.mxu0 %v526
    %558 = vmatpush1.bf16.msra.mxu0 %v525
    %559 = vmatprep.subr.bf16.mxu0 %v528
    %560 = vmatpush1.bf16.msra.mxu0 %v527
    %561 = vmatprep.subr.bf16.mxu0 %v530
    %562 = vmatpush1.bf16.msra.mxu0 %v529
    %563 = vmatprep.subr.bf16.mxu0 0
    %564 = vmatpush1.bf16.msra.mxu0 0
    %565 = vmatprep.subr.bf16.mxu0 0
    %566 = vmatpush1.bf16.msra.mxu0 0
    %567 = vmatprep.subr.bf16.mxu0 0
    %568 = vmatpush1.bf16.msra.mxu0 0
    %569 = vmatprep.subr.bf16.mxu0 0
    %570 = vmatpush1.bf16.msra.mxu0 0
    %571 = vmatprep.subr.bf16.mxu0 0
    %572 = vmatpush1.bf16.msra.mxu0 0
    %573 = vmatprep.subr.bf16.mxu0 0
    %574 = vmatpush1.bf16.msra.mxu0 0
    %575 = vmatprep.subr.bf16.mxu0 0
    %576 = vmatpush1.bf16.msra.mxu0 0
    %577 = vmatprep.subr.bf16.mxu0 0
    %578 = vmatpush1.bf16.msra.mxu0 0
    %579 = vmatprep.mubr.bf16.mxu0 0
    %580 = vmatmul.mubr.bf16.gmra.mrb[0].mxu0 %v249
    %v581 = vpop.f32.mrb[0].mxu0
    %v582 = vadd.f32 %v460, %v581
    %v583 = vpop.f32.mrb[0].mxu0
    %v584 = vadd.f32 %v464, %v583
    %v585 = vpop.f32.mrb[0].mxu0
    %v586 = vadd.f32 %v460, %v585
    %v587 = vpop.f32.mrb[0].mxu0
    %v588 = vadd.f32 %v464, %v587
    %589 = vdwg.mxu0
    %v590 = vmax.f32 %v582, 0.0
    %v591 = vmax.f32 %v584, 0.0
    %v592 = vmax.f32 %v586, 0.0
    %v593 = vmax.f32 %v588, 0.0
    %v594 = vpack.c.bf16 %v592, %v590
    %v595 = vpack.c.bf16 %v593, %v591
    %v596 = vld [vmem:[#allocation6 + $0x80] sm:$0xf]
    %v597 = vld [vmem:[#allocation6 + $0x84] sm:$0xf]
    %v598 = vld [vmem:[#allocation6 + $0x88] sm:$0xf]
    %v599 = vld [vmem:[#allocation6 + $0x8c] sm:$0xf]
    %v600 = vld [vmem:[#allocation6 + $0x90] sm:$0xf]
    %v601 = vld [vmem:[#allocation6 + $0x94] sm:$0xf]
    %v602 = vld [vmem:[#allocation6 + $0x98] sm:$0xf]
    %v603 = vld [vmem:[#allocation6 + $0x9c] sm:$0xf]
    %v604 = vld [vmem:[#allocation6 + $0xa0] sm:$0xf]
    %v605 = vld [vmem:[#allocation6 + $0xa4] sm:$0xf]
    %v606 = vld [vmem:[#allocation6 + $0xa8] sm:$0xf]
    %v607 = vld [vmem:[#allocation6 + $0xac] sm:$0xf]
    %v608 = vld [vmem:[#allocation6 + $0xb0] sm:$0xf]
    %v609 = vld [vmem:[#allocation6 + $0xb4] sm:$0xf]
    %v610 = vld [vmem:[#allocation6 + $0xb8] sm:$0xf]
    %v611 = vld [vmem:[#allocation6 + $0xbc] sm:$0xf]
    %v612 = vld [vmem:[#allocation6 + $0xc0] sm:$0xf]
    %v613 = vld [vmem:[#allocation6 + $0xc4] sm:$0xf]
    %v614 = vld [vmem:[#allocation6 + $0xc8] sm:$0xf]
    %v615 = vld [vmem:[#allocation6 + $0xcc] sm:$0xf]
    %v616 = vld [vmem:[#allocation6 + $0xd0] sm:$0xf]
    %v617 = vld [vmem:[#allocation6 + $0xd4] sm:$0xf]
    %v618 = vld [vmem:[#allocation6 + $0xd8] sm:$0xf]
    %v619 = vld [vmem:[#allocation6 + $0xdc] sm:$0xf]
    %v620 = vld [vmem:[#allocation6 + $0xe0] sm:$0xf]
    %v621 = vld [vmem:[#allocation6 + $0xe4] sm:$0xf]
    %v622 = vld [vmem:[#allocation6 + $0xe8] sm:$0xf]
    %v623 = vld [vmem:[#allocation6 + $0xec] sm:$0xf]
    %v624 = vld [vmem:[#allocation6 + $0xf0] sm:$0xf]
    %v625 = vld [vmem:[#allocation6 + $0xf4] sm:$0xf]
    %v626 = vld [vmem:[#allocation6 + $0xf8] sm:$0xf]
    %v627 = vld [vmem:[#allocation6 + $0xfc] sm:$0xf]
    %v660 = vunpack.c.l.b16 %v596
    %v661 = vunpack.c.l.b16 %v597
    %v662 = vunpack.c.l.b16 %v598
    %v663 = vunpack.c.l.b16 %v599
    %v664 = vunpack.c.l.b16 %v600
    %v665 = vunpack.c.l.b16 %v601
    %v666 = vunpack.c.l.b16 %v602
    %v667 = vunpack.c.l.b16 %v603
    %v668 = vunpack.c.l.b16 %v604
    %v669 = vunpack.c.l.b16 %v605
    %v670 = vunpack.c.l.b16 %v606
    %v671 = vunpack.c.l.b16 %v607
    %v672 = vunpack.c.l.b16 %v608
    %v673 = vunpack.c.l.b16 %v609
    %v674 = vunpack.c.l.b16 %v610
    %v675 = vunpack.c.l.b16 %v611
    %v676 = vunpack.c.l.b16 %v612
    %v677 = vunpack.c.l.b16 %v613
    %v678 = vunpack.c.l.b16 %v614
    %v679 = vunpack.c.l.b16 %v615
    %v680 = vunpack.c.l.b16 %v616
    %v681 = vunpack.c.l.b16 %v617
    %v682 = vunpack.c.l.b16 %v618
    %v683 = vunpack.c.l.b16 %v619
    %v684 = vunpack.c.l.b16 %v620
    %v685 = vunpack.c.l.b16 %v621
    %v686 = vunpack.c.l.b16 %v622
    %v687 = vunpack.c.l.b16 %v623
    %v688 = vunpack.c.l.b16 %v624
    %v689 = vunpack.c.l.b16 %v625
    %v690 = vunpack.c.l.b16 %v626
    %v691 = vunpack.c.l.b16 %v627
    %v692 = vpack.c.b16 %v661, %v660
    %v693 = vpack.c.b16 %v663, %v662
    %v694 = vpack.c.b16 %v665, %v664
    %v695 = vpack.c.b16 %v667, %v666
    %v696 = vpack.c.b16 %v669, %v668
    %v697 = vpack.c.b16 %v671, %v670
    %v698 = vpack.c.b16 %v673, %v672
    %v699 = vpack.c.b16 %v675, %v674
    %v700 = vpack.c.b16 %v677, %v676
    %v701 = vpack.c.b16 %v679, %v678
    %v702 = vpack.c.b16 %v681, %v680
    %v703 = vpack.c.b16 %v683, %v682
    %v704 = vpack.c.b16 %v685, %v684
    %v705 = vpack.c.b16 %v687, %v686
    %v706 = vpack.c.b16 %v689, %v688
    %v707 = vpack.c.b16 %v691, %v690
    %724 = vmatprep.subr.bf16.mxu0 0
    %725 = vmatpush1.bf16.msra.mxu0 %v692
    %726 = vmatprep.subr.bf16.mxu0 0
    %727 = vmatpush1.bf16.msra.mxu0 %v693
    %728 = vmatprep.subr.bf16.mxu0 0
    %729 = vmatpush1.bf16.msra.mxu0 %v694
    %730 = vmatprep.subr.bf16.mxu0 0
    %731 = vmatpush1.bf16.msra.mxu0 %v695
    %732 = vmatprep.subr.bf16.mxu0 0
    %733 = vmatpush1.bf16.msra.mxu0 %v696
    %734 = vmatprep.subr.bf16.mxu0 0
    %735 = vmatpush1.bf16.msra.mxu0 %v697
    %736 = vmatprep.subr.bf16.mxu0 0
    %737 = vmatpush1.bf16.msra.mxu0 %v698
    %738 = vmatprep.subr.bf16.mxu0 0
    %739 = vmatpush1.bf16.msra.mxu0 %v699
    %740 = vmatprep.subr.bf16.mxu0 0
    %741 = vmatpush1.bf16.msra.mxu0 %v700
    %742 = vmatprep.subr.bf16.mxu0 0
    %743 = vmatpush1.bf16.msra.mxu0 %v701
    %744 = vmatprep.subr.bf16.mxu0 0
    %745 = vmatpush1.bf16.msra.mxu0 %v702
    %746 = vmatprep.subr.bf16.mxu0 0
    %747 = vmatpush1.bf16.msra.mxu0 %v703
    %748 = vmatprep.subr.bf16.mxu0 0
    %749 = vmatpush1.bf16.msra.mxu0 %v704
    %750 = vmatprep.subr.bf16.mxu0 0
    %751 = vmatpush1.bf16.msra.mxu0 %v705
    %752 = vmatprep.subr.bf16.mxu0 0
    %753 = vmatpush1.bf16.msra.mxu0 %v706
    %754 = vmatprep.subr.bf16.mxu0 0
    %755 = vmatpush1.bf16.msra.mxu0 %v707
    %756 = vmatprep.mubr.bf16.mxu0 %v595
    %757 = vmatmul.mubr.bf16.gmra.mrb[0].mxu0 %v594
    %v758 = vpop.f32.mrb[0].mxu0
    %v759 = vadd.f32 0.0, %v758
    %v760 = vpop.f32.mrb[0].mxu0
    %v761 = vpop.f32.mrb[0].mxu0
    %v762 = vadd.f32 0.0, %v761
    %v763 = vpop.f32.mrb[0].mxu0
    %764 = vdwg.mxu0
    %v797 = vunpack.c.l.b16 %v407
    %v798 = vunpack.c.l.b16 %v408
    %v799 = vunpack.c.l.b16 %v409
    %v800 = vunpack.c.l.b16 %v410
    %v801 = vunpack.c.l.b16 %v411
    %v802 = vunpack.c.l.b16 %v412
    %v803 = vunpack.c.l.b16 %v413
    %v804 = vunpack.c.l.b16 %v414
    %v805 = vunpack.c.l.b16 %v415
    %v806 = vunpack.c.l.b16 %v416
    %v807 = vunpack.c.l.b16 %v417
    %v808 = vunpack.c.l.b16 %v418
    %v809 = vunpack.c.l.b16 %v419
    %v810 = vunpack.c.l.b16 %v420
    %v811 = vunpack.c.l.b16 %v421
    %v812 = vunpack.c.l.b16 %v422
    %v813 = vunpack.c.l.b16 %v423
    %v814 = vunpack.c.l.b16 %v424
    %v815 = vunpack.c.l.b16 %v425
    %v816 = vunpack.c.l.b16 %v426
    %v817 = vunpack.c.l.b16 %v427
    %v818 = vunpack.c.l.b16 %v428
    %v819 = vunpack.c.l.b16 %v429
    %v820 = vunpack.c.l.b16 %v430
    %v821 = vunpack.c.l.b16 %v431
    %v822 = vunpack.c.l.b16 %v432
    %v823 = vunpack.c.l.b16 %v433
    %v824 = vunpack.c.l.b16 %v434
    %v825 = vunpack.c.l.b16 %v435
    %v826 = vunpack.c.l.b16 %v436
    %v827 = vunpack.c.l.b16 %v437
    %v828 = vunpack.c.l.b16 %v438
    %v829 = vpack.c.b16 %v798, %v797
    %v830 = vpack.c.b16 %v800, %v799
    %v831 = vpack.c.b16 %v802, %v801
    %v832 = vpack.c.b16 %v804, %v803
    %v833 = vpack.c.b16 %v806, %v805
    %v834 = vpack.c.b16 %v808, %v807
    %v835 = vpack.c.b16 %v810, %v809
    %v836 = vpack.c.b16 %v812, %v811
    %v837 = vpack.c.b16 %v814, %v813
    %v838 = vpack.c.b16 %v816, %v815
    %v839 = vpack.c.b16 %v818, %v817
    %v840 = vpack.c.b16 %v820, %v819
    %v841 = vpack.c.b16 %v822, %v821
    %v842 = vpack.c.b16 %v824, %v823
    %v843 = vpack.c.b16 %v826, %v825
    %v844 = vpack.c.b16 %v828, %v827
    %861 = vmatprep.subr.bf16.mxu0 0
    %862 = vmatpush1.bf16.msra.mxu0 %v829
    %863 = vmatprep.subr.bf16.mxu0 0
    %864 = vmatpush1.bf16.msra.mxu0 %v830
    %865 = vmatprep.subr.bf16.mxu0 0
    %866 = vmatpush1.bf16.msra.mxu0 %v831
    %867 = vmatprep.subr.bf16.mxu0 0
    %868 = vmatpush1.bf16.msra.mxu0 %v832
    %869 = vmatprep.subr.bf16.mxu0 0
    %870 = vmatpush1.bf16.msra.mxu0 %v833
    %871 = vmatprep.subr.bf16.mxu0 0
    %872 = vmatpush1.bf16.msra.mxu0 %v834
    %873 = vmatprep.subr.bf16.mxu0 0
    %874 = vmatpush1.bf16.msra.mxu0 %v835
    %875 = vmatprep.subr.bf16.mxu0 0
    %876 = vmatpush1.bf16.msra.mxu0 %v836
    %877 = vmatprep.subr.bf16.mxu0 0
    %878 = vmatpush1.bf16.msra.mxu0 %v837
    %879 = vmatprep.subr.bf16.mxu0 0
    %880 = vmatpush1.bf16.msra.mxu0 %v838
    %881 = vmatprep.subr.bf16.mxu0 0
    %882 = vmatpush1.bf16.msra.mxu0 %v839
    %883 = vmatprep.subr.bf16.mxu0 0
    %884 = vmatpush1.bf16.msra.mxu0 %v840
    %885 = vmatprep.subr.bf16.mxu0 0
    %886 = vmatpush1.bf16.msra.mxu0 %v841
    %887 = vmatprep.subr.bf16.mxu0 0
    %888 = vmatpush1.bf16.msra.mxu0 %v842
    %889 = vmatprep.subr.bf16.mxu0 0
    %890 = vmatpush1.bf16.msra.mxu0 %v843
    %891 = vmatprep.subr.bf16.mxu0 0
    %892 = vmatpush1.bf16.msra.mxu0 %v844
    %893 = vmatprep.mubr.bf16.mxu0 %v406
    %894 = vmatmul.mubr.bf16.gmra.mrb[0].mxu0 %v405
    %v895 = vpop.f32.mrb[0].mxu0
    %v896 = vadd.f32 %v759, %v895
    %v897 = vpop.f32.mrb[0].mxu0
    %v898 = vpop.f32.mrb[0].mxu0
    %v899 = vadd.f32 %v762, %v898
    %v900 = vpop.f32.mrb[0].mxu0
    %901 = vdwg.mxu0
    %v902 = vld [vmem:[#allocation4 + $0x10] sm:$0xff]
    %v903 = vld [vmem:[#allocation4 + $0x30] sm:$0xff]
    %v904 = vld [vmem:[#allocation4 + $0x50] sm:$0xff]
    %v905 = vld [vmem:[#allocation4 + $0x70] sm:$0xff]
    %v906 = vld [vmem:[#allocation4 + $0x90] sm:$0xff]
    %v907 = vld [vmem:[#allocation4 + $0xb0] sm:$0xff]
    %v908 = vld [vmem:[#allocation4 + $0xd0] sm:$0xff]
    %v909 = vld [vmem:[#allocation4 + $0xf0] sm:$0xff]
    %v910 = vld [vmem:[#allocation4 + $0x110] sm:$0xff]
    %v911 = vld [vmem:[#allocation4 + $0x130] sm:$0xff]
    %v912 = vld [vmem:[#allocation4 + $0x150] sm:$0xff]
    %v913 = vld [vmem:[#allocation4 + $0x170] sm:$0xff]
    %v914 = vld [vmem:[#allocation4 + $0x190] sm:$0xff]
    %v915 = vld [vmem:[#allocation4 + $0x1b0] sm:$0xff]
    %v916 = vld [vmem:[#allocation4 + $0x1d0] sm:$0xff]
    %v917 = vld [vmem:[#allocation4 + $0x1f0] sm:$0xff]
    %v918 = vld [vmem:[%s4 + $0x4] sm:$0x3]
    %v920 = vlaneseq
    %v921 = vshrl.u32 %v920, 7
    %v922 = vsub.s32 0, %v921
    %v923 = vrot.slane %v918, %v922
    %v924 = vlaneseq
    %v925 = vshrl.u32 %v924, 7
    %v926 = vsub.s32 1, %v925
    %v927 = vrot.slane %v918, %v926
    %v946 = vunpack.c.l.b16 %v902
    %v947 = vunpack.c.h.b16 %v902
    %v948 = vunpack.c.l.b16 %v903
    %v949 = vunpack.c.h.b16 %v903
    %v950 = vunpack.c.l.b16 %v904
    %v951 = vunpack.c.h.b16 %v904
    %v952 = vunpack.c.l.b16 %v905
    %v953 = vunpack.c.h.b16 %v905
    %v954 = vunpack.c.l.b16 %v906
    %v955 = vunpack.c.h.b16 %v906
    %v956 = vunpack.c.l.b16 %v907
    %v957 = vunpack.c.h.b16 %v907
    %v958 = vunpack.c.l.b16 %v908
    %v959 = vunpack.c.h.b16 %v908
    %v960 = vunpack.c.l.b16 %v909
    %v961 = vunpack.c.h.b16 %v909
    %v962 = vunpack.c.l.b16 %v910
    %v963 = vunpack.c.h.b16 %v910
    %v964 = vunpack.c.l.b16 %v911
    %v965 = vunpack.c.h.b16 %v911
    %v966 = vunpack.c.l.b16 %v912
    %v967 = vunpack.c.h.b16 %v912
    %v968 = vunpack.c.l.b16 %v913
    %v969 = vunpack.c.h.b16 %v913
    %v970 = vunpack.c.l.b16 %v914
    %v971 = vunpack.c.h.b16 %v914
    %v972 = vunpack.c.l.b16 %v915
    %v973 = vunpack.c.h.b16 %v915
    %v974 = vunpack.c.l.b16 %v916
    %v975 = vunpack.c.h.b16 %v916
    %v976 = vunpack.c.l.b16 %v917
    %v977 = vunpack.c.h.b16 %v917
    %v978 = vpack.c.b16 %v948, %v946
    %v979 = vpack.c.b16 %v949, %v947
    %v980 = vpack.c.b16 %v952, %v950
    %v981 = vpack.c.b16 %v953, %v951
    %v982 = vpack.c.b16 %v956, %v954
    %v983 = vpack.c.b16 %v957, %v955
    %v984 = vpack.c.b16 %v960, %v958
    %v985 = vpack.c.b16 %v961, %v959
    %v986 = vpack.c.b16 %v964, %v962
    %v987 = vpack.c.b16 %v965, %v963
    %v988 = vpack.c.b16 %v968, %v966
    %v989 = vpack.c.b16 %v969, %v967
    %v990 = vpack.c.b16 %v972, %v970
    %v991 = vpack.c.b16 %v973, %v971
    %v992 = vpack.c.b16 %v976, %v974
    %v993 = vpack.c.b16 %v977, %v975
    %1010 = vmatprep.subr.bf16.mxu0 %v979
    %1011 = vmatpush1.bf16.msra.mxu0 %v978
    %1012 = vmatprep.subr.bf16.mxu0 %v981
    %1013 = vmatpush1.bf16.msra.mxu0 %v980
    %1014 = vmatprep.subr.bf16.mxu0 %v983
    %1015 = vmatpush1.bf16.msra.mxu0 %v982
    %1016 = vmatprep.subr.bf16.mxu0 %v985
    %1017 = vmatpush1.bf16.msra.mxu0 %v984
    %1018 = vmatprep.subr.bf16.mxu0 %v987
    %1019 = vmatpush1.bf16.msra.mxu0 %v986
    %1020 = vmatprep.subr.bf16.mxu0 %v989
    %1021 = vmatpush1.bf16.msra.mxu0 %v988
    %1022 = vmatprep.subr.bf16.mxu0 %v991
    %1023 = vmatpush1.bf16.msra.mxu0 %v990
    %1024 = vmatprep.subr.bf16.mxu0 %v993
    %1025 = vmatpush1.bf16.msra.mxu0 %v992
    %1026 = vmatprep.subr.bf16.mxu0 0
    %1027 = vmatpush1.bf16.msra.mxu0 0
    %1028 = vmatprep.subr.bf16.mxu0 0
    %1029 = vmatpush1.bf16.msra.mxu0 0
    %1030 = vmatprep.subr.bf16.mxu0 0
    %1031 = vmatpush1.bf16.msra.mxu0 0
    %1032 = vmatprep.subr.bf16.mxu0 0
    %1033 = vmatpush1.bf16.msra.mxu0 0
    %1034 = vmatprep.subr.bf16.mxu0 0
    %1035 = vmatpush1.bf16.msra.mxu0 0
    %1036 = vmatprep.subr.bf16.mxu0 0
    %1037 = vmatpush1.bf16.msra.mxu0 0
    %1038 = vmatprep.subr.bf16.mxu0 0
    %1039 = vmatpush1.bf16.msra.mxu0 0
    %1040 = vmatprep.subr.bf16.mxu0 0
    %1041 = vmatpush1.bf16.msra.mxu0 0
    %1042 = vmatprep.mubr.bf16.mxu0 0
    %1043 = vmatmul.mubr.bf16.gmra.mrb[0].mxu0 %v249
    %v1044 = vpop.f32.mrb[0].mxu0
    %v1045 = vadd.f32 %v923, %v1044
    %v1046 = vpop.f32.mrb[0].mxu0
    %v1047 = vadd.f32 %v927, %v1046
    %v1048 = vpop.f32.mrb[0].mxu0
    %v1049 = vadd.f32 %v923, %v1048
    %v1050 = vpop.f32.mrb[0].mxu0
    %v1051 = vadd.f32 %v927, %v1050
    %1052 = vdwg.mxu0
    %v1053 = vmax.f32 %v1045, 0.0
    %v1054 = vmax.f32 %v1047, 0.0
    %v1055 = vmax.f32 %v1049, 0.0
    %v1056 = vmax.f32 %v1051, 0.0
    %v1057 = vpack.c.bf16 %v1055, %v1053
    %v1058 = vpack.c.bf16 %v1056, %v1054
    %v1059 = vld [vmem:[#allocation6 + $0x100] sm:$0xf]
    %v1060 = vld [vmem:[#allocation6 + $0x104] sm:$0xf]
    %v1061 = vld [vmem:[#allocation6 + $0x108] sm:$0xf]
    %v1062 = vld [vmem:[#allocation6 + $0x10c] sm:$0xf]
    %v1063 = vld [vmem:[#allocation6 + $0x110] sm:$0xf]
    %v1064 = vld [vmem:[#allocation6 + $0x114] sm:$0xf]
    %v1065 = vld [vmem:[#allocation6 + $0x118] sm:$0xf]
    %v1066 = vld [vmem:[#allocation6 + $0x11c] sm:$0xf]
    %v1067 = vld [vmem:[#allocation6 + $0x120] sm:$0xf]
    %v1068 = vld [vmem:[#allocation6 + $0x124] sm:$0xf]
    %v1069 = vld [vmem:[#allocation6 + $0x128] sm:$0xf]
    %v1070 = vld [vmem:[#allocation6 + $0x12c] sm:$0xf]
    %v1071 = vld [vmem:[#allocation6 + $0x130] sm:$0xf]
    %v1072 = vld [vmem:[#allocation6 + $0x134] sm:$0xf]
    %v1073 = vld [vmem:[#allocation6 + $0x138] sm:$0xf]
    %v1074 = vld [vmem:[#allocation6 + $0x13c] sm:$0xf]
    %v1075 = vld [vmem:[#allocation6 + $0x140] sm:$0xf]
    %v1076 = vld [vmem:[#allocation6 + $0x144] sm:$0xf]
    %v1077 = vld [vmem:[#allocation6 + $0x148] sm:$0xf]
    %v1078 = vld [vmem:[#allocation6 + $0x14c] sm:$0xf]
    %v1079 = vld [vmem:[#allocation6 + $0x150] sm:$0xf]
    %v1080 = vld [vmem:[#allocation6 + $0x154] sm:$0xf]
    %v1081 = vld [vmem:[#allocation6 + $0x158] sm:$0xf]
    %v1082 = vld [vmem:[#allocation6 + $0x15c] sm:$0xf]
    %v1083 = vld [vmem:[#allocation6 + $0x160] sm:$0xf]
    %v1084 = vld [vmem:[#allocation6 + $0x164] sm:$0xf]
    %v1085 = vld [vmem:[#allocation6 + $0x168] sm:$0xf]
    %v1086 = vld [vmem:[#allocation6 + $0x16c] sm:$0xf]
    %v1087 = vld [vmem:[#allocation6 + $0x170] sm:$0xf]
    %v1088 = vld [vmem:[#allocation6 + $0x174] sm:$0xf]
    %v1089 = vld [vmem:[#allocation6 + $0x178] sm:$0xf]
    %v1090 = vld [vmem:[#allocation6 + $0x17c] sm:$0xf]
    %v1123 = vunpack.c.l.b16 %v1059
    %v1124 = vunpack.c.l.b16 %v1060
    %v1125 = vunpack.c.l.b16 %v1061
    %v1126 = vunpack.c.l.b16 %v1062
    %v1127 = vunpack.c.l.b16 %v1063
    %v1128 = vunpack.c.l.b16 %v1064
    %v1129 = vunpack.c.l.b16 %v1065
    %v1130 = vunpack.c.l.b16 %v1066
    %v1131 = vunpack.c.l.b16 %v1067
    %v1132 = vunpack.c.l.b16 %v1068
    %v1133 = vunpack.c.l.b16 %v1069
    %v1134 = vunpack.c.l.b16 %v1070
    %v1135 = vunpack.c.l.b16 %v1071
    %v1136 = vunpack.c.l.b16 %v1072
    %v1137 = vunpack.c.l.b16 %v1073
    %v1138 = vunpack.c.l.b16 %v1074
    %v1139 = vunpack.c.l.b16 %v1075
    %v1140 = vunpack.c.l.b16 %v1076
    %v1141 = vunpack.c.l.b16 %v1077
    %v1142 = vunpack.c.l.b16 %v1078
    %v1143 = vunpack.c.l.b16 %v1079
    %v1144 = vunpack.c.l.b16 %v1080
    %v1145 = vunpack.c.l.b16 %v1081
    %v1146 = vunpack.c.l.b16 %v1082
    %v1147 = vunpack.c.l.b16 %v1083
    %v1148 = vunpack.c.l.b16 %v1084
    %v1149 = vunpack.c.l.b16 %v1085
    %v1150 = vunpack.c.l.b16 %v1086
    %v1151 = vunpack.c.l.b16 %v1087
    %v1152 = vunpack.c.l.b16 %v1088
    %v1153 = vunpack.c.l.b16 %v1089
    %v1154 = vunpack.c.l.b16 %v1090
    %v1155 = vpack.c.b16 %v1124, %v1123
    %v1156 = vpack.c.b16 %v1126, %v1125
    %v1157 = vpack.c.b16 %v1128, %v1127
    %v1158 = vpack.c.b16 %v1130, %v1129
    %v1159 = vpack.c.b16 %v1132, %v1131
    %v1160 = vpack.c.b16 %v1134, %v1133
    %v1161 = vpack.c.b16 %v1136, %v1135
    %v1162 = vpack.c.b16 %v1138, %v1137
    %v1163 = vpack.c.b16 %v1140, %v1139
    %v1164 = vpack.c.b16 %v1142, %v1141
    %v1165 = vpack.c.b16 %v1144, %v1143
    %v1166 = vpack.c.b16 %v1146, %v1145
    %v1167 = vpack.c.b16 %v1148, %v1147
    %v1168 = vpack.c.b16 %v1150, %v1149
    %v1169 = vpack.c.b16 %v1152, %v1151
    %v1170 = vpack.c.b16 %v1154, %v1153
    %1187 = vmatprep.subr.bf16.mxu0 0
    %1188 = vmatpush1.bf16.msra.mxu0 %v1155
    %1189 = vmatprep.subr.bf16.mxu0 0
    %1190 = vmatpush1.bf16.msra.mxu0 %v1156
    %1191 = vmatprep.subr.bf16.mxu0 0
    %1192 = vmatpush1.bf16.msra.mxu0 %v1157
    %1193 = vmatprep.subr.bf16.mxu0 0
    %1194 = vmatpush1.bf16.msra.mxu0 %v1158
    %1195 = vmatprep.subr.bf16.mxu0 0
    %1196 = vmatpush1.bf16.msra.mxu0 %v1159
    %1197 = vmatprep.subr.bf16.mxu0 0
    %1198 = vmatpush1.bf16.msra.mxu0 %v1160
    %1199 = vmatprep.subr.bf16.mxu0 0
    %1200 = vmatpush1.bf16.msra.mxu0 %v1161
    %1201 = vmatprep.subr.bf16.mxu0 0
    %1202 = vmatpush1.bf16.msra.mxu0 %v1162
    %1203 = vmatprep.subr.bf16.mxu0 0
    %1204 = vmatpush1.bf16.msra.mxu0 %v1163
    %1205 = vmatprep.subr.bf16.mxu0 0
    %1206 = vmatpush1.bf16.msra.mxu0 %v1164
    %1207 = vmatprep.subr.bf16.mxu0 0
    %1208 = vmatpush1.bf16.msra.mxu0 %v1165
    %1209 = vmatprep.subr.bf16.mxu0 0
    %1210 = vmatpush1.bf16.msra.mxu0 %v1166
    %1211 = vmatprep.subr.bf16.mxu0 0
    %1212 = vmatpush1.bf16.msra.mxu0 %v1167
    %1213 = vmatprep.subr.bf16.mxu0 0
    %1214 = vmatpush1.bf16.msra.mxu0 %v1168
    %1215 = vmatprep.subr.bf16.mxu0 0
    %1216 = vmatpush1.bf16.msra.mxu0 %v1169
    %1217 = vmatprep.subr.bf16.mxu0 0
    %1218 = vmatpush1.bf16.msra.mxu0 %v1170
    %1219 = vmatprep.mubr.bf16.mxu0 %v1058
    %1220 = vmatmul.mubr.bf16.gmra.mrb[0].mxu0 %v1057
    %v1221 = vpop.f32.mrb[0].mxu0
    %v1222 = vadd.f32 0.0, %v1221
    %v1223 = vpop.f32.mrb[0].mxu0
    %v1224 = vpop.f32.mrb[0].mxu0
    %v1225 = vadd.f32 0.0, %v1224
    %v1226 = vpop.f32.mrb[0].mxu0
    %1227 = vdwg.mxu0
    %v1228 = vadd.f32 %v896, %v1222
    %v1229 = vadd.f32 %v899, %v1225
    %v1230 = vld [vmem:[#allocation4 + $0x18] sm:$0xff]
    %v1231 = vld [vmem:[#allocation4 + $0x38] sm:$0xff]
    %v1232 = vld [vmem:[#allocation4 + $0x58] sm:$0xff]
    %v1233 = vld [vmem:[#allocation4 + $0x78] sm:$0xff]
    %v1234 = vld [vmem:[#allocation4 + $0x98] sm:$0xff]
    %v1235 = vld [vmem:[#allocation4 + $0xb8] sm:$0xff]
    %v1236 = vld [vmem:[#allocation4 + $0xd8] sm:$0xff]
    %v1237 = vld [vmem:[#allocation4 + $0xf8] sm:$0xff]
    %v1238 = vld [vmem:[#allocation4 + $0x118] sm:$0xff]
    %v1239 = vld [vmem:[#allocation4 + $0x138] sm:$0xff]
    %v1240 = vld [vmem:[#allocation4 + $0x158] sm:$0xff]
    %v1241 = vld [vmem:[#allocation4 + $0x178] sm:$0xff]
    %v1242 = vld [vmem:[#allocation4 + $0x198] sm:$0xff]
    %v1243 = vld [vmem:[#allocation4 + $0x1b8] sm:$0xff]
    %v1244 = vld [vmem:[#allocation4 + $0x1d8] sm:$0xff]
    %v1245 = vld [vmem:[#allocation4 + $0x1f8] sm:$0xff]
    %v1246 = vld [vmem:[%s4 + $0x6] sm:$0x3]
    %v1248 = vlaneseq
    %v1249 = vshrl.u32 %v1248, 7
    %v1250 = vsub.s32 0, %v1249
    %v1251 = vrot.slane %v1246, %v1250
    %v1252 = vlaneseq
    %v1253 = vshrl.u32 %v1252, 7
    %v1254 = vsub.s32 1, %v1253
    %v1255 = vrot.slane %v1246, %v1254
    %v1274 = vunpack.c.l.b16 %v1230
    %v1275 = vunpack.c.h.b16 %v1230
    %v1276 = vunpack.c.l.b16 %v1231
    %v1277 = vunpack.c.h.b16 %v1231
    %v1278 = vunpack.c.l.b16 %v1232
    %v1279 = vunpack.c.h.b16 %v1232
    %v1280 = vunpack.c.l.b16 %v1233
    %v1281 = vunpack.c.h.b16 %v1233
    %v1282 = vunpack.c.l.b16 %v1234
    %v1283 = vunpack.c.h.b16 %v1234
    %v1284 = vunpack.c.l.b16 %v1235
    %v1285 = vunpack.c.h.b16 %v1235
    %v1286 = vunpack.c.l.b16 %v1236
    %v1287 = vunpack.c.h.b16 %v1236
    %v1288 = vunpack.c.l.b16 %v1237
    %v1289 = vunpack.c.h.b16 %v1237
    %v1290 = vunpack.c.l.b16 %v1238
    %v1291 = vunpack.c.h.b16 %v1238
    %v1292 = vunpack.c.l.b16 %v1239
    %v1293 = vunpack.c.h.b16 %v1239
    %v1294 = vunpack.c.l.b16 %v1240
    %v1295 = vunpack.c.h.b16 %v1240
    %v1296 = vunpack.c.l.b16 %v1241
    %v1297 = vunpack.c.h.b16 %v1241
    %v1298 = vunpack.c.l.b16 %v1242
    %v1299 = vunpack.c.h.b16 %v1242
    %v1300 = vunpack.c.l.b16 %v1243
    %v1301 = vunpack.c.h.b16 %v1243
    %v1302 = vunpack.c.l.b16 %v1244
    %v1303 = vunpack.c.h.b16 %v1244
    %v1304 = vunpack.c.l.b16 %v1245
    %v1305 = vunpack.c.h.b16 %v1245
    %v1306 = vpack.c.b16 %v1276, %v1274
    %v1307 = vpack.c.b16 %v1277, %v1275
    %v1308 = vpack.c.b16 %v1280, %v1278
    %v1309 = vpack.c.b16 %v1281, %v1279
    %v1310 = vpack.c.b16 %v1284, %v1282
    %v1311 = vpack.c.b16 %v1285, %v1283
    %v1312 = vpack.c.b16 %v1288, %v1286
    %v1313 = vpack.c.b16 %v1289, %v1287
    %v1314 = vpack.c.b16 %v1292, %v1290
    %v1315 = vpack.c.b16 %v1293, %v1291
    %v1316 = vpack.c.b16 %v1296, %v1294
    %v1317 = vpack.c.b16 %v1297, %v1295
    %v1318 = vpack.c.b16 %v1300, %v1298
    %v1319 = vpack.c.b16 %v1301, %v1299
    %v1320 = vpack.c.b16 %v1304, %v1302
    %v1321 = vpack.c.b16 %v1305, %v1303
    %1338 = vmatprep.subr.bf16.mxu0 %v1307
    %1339 = vmatpush1.bf16.msra.mxu0 %v1306
    %1340 = vmatprep.subr.bf16.mxu0 %v1309
    %1341 = vmatpush1.bf16.msra.mxu0 %v1308
    %1342 = vmatprep.subr.bf16.mxu0 %v1311
    %1343 = vmatpush1.bf16.msra.mxu0 %v1310
    %1344 = vmatprep.subr.bf16.mxu0 %v1313
    %1345 = vmatpush1.bf16.msra.mxu0 %v1312
    %1346 = vmatprep.subr.bf16.mxu0 %v1315
    %1347 = vmatpush1.bf16.msra.mxu0 %v1314
    %1348 = vmatprep.subr.bf16.mxu0 %v1317
    %1349 = vmatpush1.bf16.msra.mxu0 %v1316
    %1350 = vmatprep.subr.bf16.mxu0 %v1319
    %1351 = vmatpush1.bf16.msra.mxu0 %v1318
    %1352 = vmatprep.subr.bf16.mxu0 %v1321
    %1353 = vmatpush1.bf16.msra.mxu0 %v1320
    %1354 = vmatprep.subr.bf16.mxu0 0
    %1355 = vmatpush1.bf16.msra.mxu0 0
    %1356 = vmatprep.subr.bf16.mxu0 0
    %1357 = vmatpush1.bf16.msra.mxu0 0
    %1358 = vmatprep.subr.bf16.mxu0 0
    %1359 = vmatpush1.bf16.msra.mxu0 0
    %1360 = vmatprep.subr.bf16.mxu0 0
    %1361 = vmatpush1.bf16.msra.mxu0 0
    %1362 = vmatprep.subr.bf16.mxu0 0
    %1363 = vmatpush1.bf16.msra.mxu0 0
    %1364 = vmatprep.subr.bf16.mxu0 0
    %1365 = vmatpush1.bf16.msra.mxu0 0
    %1366 = vmatprep.subr.bf16.mxu0 0
    %1367 = vmatpush1.bf16.msra.mxu0 0
    %1368 = vmatprep.subr.bf16.mxu0 0
    %1369 = vmatpush1.bf16.msra.mxu0 0
    %1370 = vmatprep.mubr.bf16.mxu0 0
    %1371 = vmatmul.mubr.bf16.gmra.mrb[0].mxu0 %v249
    %v1372 = vpop.f32.mrb[0].mxu0
    %v1373 = vadd.f32 %v1251, %v1372
    %v1374 = vpop.f32.mrb[0].mxu0
    %v1375 = vadd.f32 %v1255, %v1374
    %v1376 = vpop.f32.mrb[0].mxu0
    %v1377 = vadd.f32 %v1251, %v1376
    %v1378 = vpop.f32.mrb[0].mxu0
    %v1379 = vadd.f32 %v1255, %v1378
    %1380 = vdwg.mxu0
    %v1381 = vmax.f32 %v1373, 0.0
    %v1382 = vmax.f32 %v1375, 0.0
    %v1383 = vmax.f32 %v1377, 0.0
    %v1384 = vmax.f32 %v1379, 0.0
    %v1385 = vpack.c.bf16 %v1383, %v1381
    %v1386 = vpack.c.bf16 %v1384, %v1382
    %v1387 = vld [vmem:[#allocation6 + $0x180] sm:$0xf]
    %v1388 = vld [vmem:[#allocation6 + $0x184] sm:$0xf]
    %v1389 = vld [vmem:[#allocation6 + $0x188] sm:$0xf]
    %v1390 = vld [vmem:[#allocation6 + $0x18c] sm:$0xf]
    %v1391 = vld [vmem:[#allocation6 + $0x190] sm:$0xf]
    %v1392 = vld [vmem:[#allocation6 + $0x194] sm:$0xf]
    %v1393 = vld [vmem:[#allocation6 + $0x198] sm:$0xf]
    %v1394 = vld [vmem:[#allocation6 + $0x19c] sm:$0xf]
    %v1395 = vld [vmem:[#allocation6 + $0x1a0] sm:$0xf]
    %v1396 = vld [vmem:[#allocation6 + $0x1a4] sm:$0xf]
    %v1397 = vld [vmem:[#allocation6 + $0x1a8] sm:$0xf]
    %v1398 = vld [vmem:[#allocation6 + $0x1ac] sm:$0xf]
    %v1399 = vld [vmem:[#allocation6 + $0x1b0] sm:$0xf]
    %v1400 = vld [vmem:[#allocation6 + $0x1b4] sm:$0xf]
    %v1401 = vld [vmem:[#allocation6 + $0x1b8] sm:$0xf]
    %v1402 = vld [vmem:[#allocation6 + $0x1bc] sm:$0xf]
    %v1403 = vld [vmem:[#allocation6 + $0x1c0] sm:$0xf]
    %v1404 = vld [vmem:[#allocation6 + $0x1c4] sm:$0xf]
    %v1405 = vld [vmem:[#allocation6 + $0x1c8] sm:$0xf]
    %v1406 = vld [vmem:[#allocation6 + $0x1cc] sm:$0xf]
    %v1407 = vld [vmem:[#allocation6 + $0x1d0] sm:$0xf]
    %v1408 = vld [vmem:[#allocation6 + $0x1d4] sm:$0xf]
    %v1409 = vld [vmem:[#allocation6 + $0x1d8] sm:$0xf]
    %v1410 = vld [vmem:[#allocation6 + $0x1dc] sm:$0xf]
    %v1411 = vld [vmem:[#allocation6 + $0x1e0] sm:$0xf]
    %v1412 = vld [vmem:[#allocation6 + $0x1e4] sm:$0xf]
    %v1413 = vld [vmem:[#allocation6 + $0x1e8] sm:$0xf]
    %v1414 = vld [vmem:[#allocation6 + $0x1ec] sm:$0xf]
    %v1415 = vld [vmem:[#allocation6 + $0x1f0] sm:$0xf]
    %v1416 = vld [vmem:[#allocation6 + $0x1f4] sm:$0xf]
    %v1417 = vld [vmem:[#allocation6 + $0x1f8] sm:$0xf]
    %v1418 = vld [vmem:[#allocation6 + $0x1fc] sm:$0xf]
    %v1451 = vunpack.c.l.b16 %v1387
    %v1452 = vunpack.c.l.b16 %v1388
    %v1453 = vunpack.c.l.b16 %v1389
    %v1454 = vunpack.c.l.b16 %v1390
    %v1455 = vunpack.c.l.b16 %v1391
    %v1456 = vunpack.c.l.b16 %v1392
    %v1457 = vunpack.c.l.b16 %v1393
    %v1458 = vunpack.c.l.b16 %v1394
    %v1459 = vunpack.c.l.b16 %v1395
    %v1460 = vunpack.c.l.b16 %v1396
    %v1461 = vunpack.c.l.b16 %v1397
    %v1462 = vunpack.c.l.b16 %v1398
    %v1463 = vunpack.c.l.b16 %v1399
    %v1464 = vunpack.c.l.b16 %v1400
    %v1465 = vunpack.c.l.b16 %v1401
    %v1466 = vunpack.c.l.b16 %v1402
    %v1467 = vunpack.c.l.b16 %v1403
    %v1468 = vunpack.c.l.b16 %v1404
    %v1469 = vunpack.c.l.b16 %v1405
    %v1470 = vunpack.c.l.b16 %v1406
    %v1471 = vunpack.c.l.b16 %v1407
    %v1472 = vunpack.c.l.b16 %v1408
    %v1473 = vunpack.c.l.b16 %v1409
    %v1474 = vunpack.c.l.b16 %v1410
    %v1475 = vunpack.c.l.b16 %v1411
    %v1476 = vunpack.c.l.b16 %v1412
    %v1477 = vunpack.c.l.b16 %v1413
    %v1478 = vunpack.c.l.b16 %v1414
    %v1479 = vunpack.c.l.b16 %v1415
    %v1480 = vunpack.c.l.b16 %v1416
    %v1481 = vunpack.c.l.b16 %v1417
    %v1482 = vunpack.c.l.b16 %v1418
    %v1483 = vpack.c.b16 %v1452, %v1451
    %v1484 = vpack.c.b16 %v1454, %v1453
    %v1485 = vpack.c.b16 %v1456, %v1455
    %v1486 = vpack.c.b16 %v1458, %v1457
    %v1487 = vpack.c.b16 %v1460, %v1459
    %v1488 = vpack.c.b16 %v1462, %v1461
    %v1489 = vpack.c.b16 %v1464, %v1463
    %v1490 = vpack.c.b16 %v1466, %v1465
    %v1491 = vpack.c.b16 %v1468, %v1467
    %v1492 = vpack.c.b16 %v1470, %v1469
    %v1493 = vpack.c.b16 %v1472, %v1471
    %v1494 = vpack.c.b16 %v1474, %v1473
    %v1495 = vpack.c.b16 %v1476, %v1475
    %v1496 = vpack.c.b16 %v1478, %v1477
    %v1497 = vpack.c.b16 %v1480, %v1479
    %v1498 = vpack.c.b16 %v1482, %v1481
    %1515 = vmatprep.subr.bf16.mxu0 0
    %1516 = vmatpush1.bf16.msra.mxu0 %v1483
    %1517 = vmatprep.subr.bf16.mxu0 0
    %1518 = vmatpush1.bf16.msra.mxu0 %v1484
    %1519 = vmatprep.subr.bf16.mxu0 0
    %1520 = vmatpush1.bf16.msra.mxu0 %v1485
    %1521 = vmatprep.subr.bf16.mxu0 0
    %1522 = vmatpush1.bf16.msra.mxu0 %v1486
    %1523 = vmatprep.subr.bf16.mxu0 0
    %1524 = vmatpush1.bf16.msra.mxu0 %v1487
    %1525 = vmatprep.subr.bf16.mxu0 0
    %1526 = vmatpush1.bf16.msra.mxu0 %v1488
    %1527 = vmatprep.subr.bf16.mxu0 0
    %1528 = vmatpush1.bf16.msra.mxu0 %v1489
    %1529 = vmatprep.subr.bf16.mxu0 0
    %1530 = vmatpush1.bf16.msra.mxu0 %v1490
    %1531 = vmatprep.subr.bf16.mxu0 0
    %1532 = vmatpush1.bf16.msra.mxu0 %v1491
    %1533 = vmatprep.subr.bf16.mxu0 0
    %1534 = vmatpush1.bf16.msra.mxu0 %v1492
    %1535 = vmatprep.subr.bf16.mxu0 0
    %1536 = vmatpush1.bf16.msra.mxu0 %v1493
    %1537 = vmatprep.subr.bf16.mxu0 0
    %1538 = vmatpush1.bf16.msra.mxu0 %v1494
    %1539 = vmatprep.subr.bf16.mxu0 0
    %1540 = vmatpush1.bf16.msra.mxu0 %v1495
    %1541 = vmatprep.subr.bf16.mxu0 0
    %1542 = vmatpush1.bf16.msra.mxu0 %v1496
    %1543 = vmatprep.subr.bf16.mxu0 0
    %1544 = vmatpush1.bf16.msra.mxu0 %v1497
    %1545 = vmatprep.subr.bf16.mxu0 0
    %1546 = vmatpush1.bf16.msra.mxu0 %v1498
    %1547 = vmatprep.mubr.bf16.mxu0 %v1386
    %1548 = vmatmul.mubr.bf16.gmra.mrb[0].mxu0 %v1385
    %v1549 = vpop.f32.mrb[0].mxu0
    %v1550 = vadd.f32 0.0, %v1549
    %v1551 = vpop.f32.mrb[0].mxu0
    %v1552 = vpop.f32.mrb[0].mxu0
    %v1553 = vadd.f32 0.0, %v1552
    %v1554 = vpop.f32.mrb[0].mxu0
    %1555 = vdwg.mxu0
    %v1556 = vadd.f32 %v1228, %v1550
    %v1557 = vadd.f32 %v1229, %v1553
    %v1558 = vld [vmem:[%s6] sm:$0x1]
    %v1560 = vlaneseq
    %v1561 = vshrl.u32 %v1560, 7
    %v1562 = vsub.s32 0, %v1561
    %v1563 = vrot.slane %v1558, %v1562
    %v1565 = vadd.f32 %v1556, %v1563
    %v1566 = vadd.f32 %v1557, %v1563
    %v1567 = vmax.f32 %v1565, 0.0
    %v1568 = vmax.f32 %v1566, 0.0
    %v1569 = vpack.c.bf16 %v1568, %v1567
    %v1570 = vld [vmem:[#allocation7] sm:$0xf]
    %v1571 = vld [vmem:[#allocation7 + $0x4] sm:$0xf]
    %v1572 = vld [vmem:[#allocation7 + $0x8] sm:$0xf]
    %v1573 = vld [vmem:[#allocation7 + $0xc] sm:$0xf]
    %v1574 = vld [vmem:[#allocation7 + $0x10] sm:$0xf]
    %v1575 = vld [vmem:[#allocation7 + $0x14] sm:$0xf]
    %v1576 = vld [vmem:[#allocation7 + $0x18] sm:$0xf]
    %v1577 = vld [vmem:[#allocation7 + $0x1c] sm:$0xf]
    %v1578 = vld [vmem:[#allocation7 + $0x20] sm:$0xf]
    %v1579 = vld [vmem:[#allocation7 + $0x24] sm:$0xf]
    %v1580 = vld [vmem:[#allocation7 + $0x28] sm:$0xf]
    %v1581 = vld [vmem:[#allocation7 + $0x2c] sm:$0xf]
    %v1582 = vld [vmem:[#allocation7 + $0x30] sm:$0xf]
    %v1583 = vld [vmem:[#allocation7 + $0x34] sm:$0xf]
    %v1584 = vld [vmem:[#allocation7 + $0x38] sm:$0xf]
    %v1585 = vld [vmem:[#allocation7 + $0x3c] sm:$0xf]
    %v1586 = vld [vmem:[%s8] sm:$0x1]
    %v1588 = vlaneseq
    %v1589 = vshrl.u32 %v1588, 7
    %v1590 = vsub.s32 0, %v1589
    %v1591 = vrot.slane %v1586, %v1590
    %v1609 = vunpack.c.l.b16 %v1570
    %v1610 = vunpack.c.l.b16 %v1571
    %v1611 = vunpack.c.l.b16 %v1572
    %v1612 = vunpack.c.l.b16 %v1573
    %v1613 = vunpack.c.l.b16 %v1574
    %v1614 = vunpack.c.l.b16 %v1575
    %v1615 = vunpack.c.l.b16 %v1576
    %v1616 = vunpack.c.l.b16 %v1577
    %v1617 = vunpack.c.l.b16 %v1578
    %v1618 = vunpack.c.l.b16 %v1579
    %v1619 = vunpack.c.l.b16 %v1580
    %v1620 = vunpack.c.l.b16 %v1581
    %v1621 = vunpack.c.l.b16 %v1582
    %v1622 = vunpack.c.l.b16 %v1583
    %v1623 = vunpack.c.l.b16 %v1584
    %v1624 = vunpack.c.l.b16 %v1585
    %v1625 = vpack.c.b16 %v1610, %v1609
    %v1626 = vpack.c.b16 %v1612, %v1611
    %v1627 = vpack.c.b16 %v1614, %v1613
    %v1628 = vpack.c.b16 %v1616, %v1615
    %v1629 = vpack.c.b16 %v1618, %v1617
    %v1630 = vpack.c.b16 %v1620, %v1619
    %v1631 = vpack.c.b16 %v1622, %v1621
    %v1632 = vpack.c.b16 %v1624, %v1623
    %1641 = vmatprep.subr.bf16.mxu0 0
    %1642 = vmatpush1.bf16.msra.mxu0 %v1625
    %1643 = vmatprep.subr.bf16.mxu0 0
    %1644 = vmatpush1.bf16.msra.mxu0 %v1626
    %1645 = vmatprep.subr.bf16.mxu0 0
    %1646 = vmatpush1.bf16.msra.mxu0 %v1627
    %1647 = vmatprep.subr.bf16.mxu0 0
    %1648 = vmatpush1.bf16.msra.mxu0 %v1628
    %1649 = vmatprep.subr.bf16.mxu0 0
    %1650 = vmatpush1.bf16.msra.mxu0 %v1629
    %1651 = vmatprep.subr.bf16.mxu0 0
    %1652 = vmatpush1.bf16.msra.mxu0 %v1630
    %1653 = vmatprep.subr.bf16.mxu0 0
    %1654 = vmatpush1.bf16.msra.mxu0 %v1631
    %1655 = vmatprep.subr.bf16.mxu0 0
    %1656 = vmatpush1.bf16.msra.mxu0 %v1632
    %1657 = vmatprep.subr.bf16.mxu0 0
    %1658 = vmatpush1.bf16.msra.mxu0 0
    %1659 = vmatprep.subr.bf16.mxu0 0
    %1660 = vmatpush1.bf16.msra.mxu0 0
    %1661 = vmatprep.subr.bf16.mxu0 0
    %1662 = vmatpush1.bf16.msra.mxu0 0
    %1663 = vmatprep.subr.bf16.mxu0 0
    %1664 = vmatpush1.bf16.msra.mxu0 0
    %1665 = vmatprep.subr.bf16.mxu0 0
    %1666 = vmatpush1.bf16.msra.mxu0 0
    %1667 = vmatprep.subr.bf16.mxu0 0
    %1668 = vmatpush1.bf16.msra.mxu0 0
    %1669 = vmatprep.subr.bf16.mxu0 0
    %1670 = vmatpush1.bf16.msra.mxu0 0
    %1671 = vmatprep.subr.bf16.mxu0 0
    %1672 = vmatpush1.bf16.msra.mxu0 0
    %1673 = vmatprep.mubr.bf16.mxu0 0
    %1674 = vmatmul.mubr.bf16.gmra.mrb[0].mxu0 %v1569
    %v1675 = vpop.f32.mrb[0].mxu0
    %v1676 = vadd.f32 %v1591, %v1675
    %v1677 = vpop.f32.mrb[0].mxu0
    %v1678 = vpop.f32.mrb[0].mxu0
    %v1679 = vadd.f32 %v1591, %v1678
    %v1680 = vpop.f32.mrb[0].mxu0
    %1681 = vdwg.mxu0
    %v1682 = vmax.f32 %v1676, 0.0
    %v1683 = vmax.f32 %v1679, 0.0
    %v1684 = vpack.c.bf16 %v1683, %v1682
    %v1685 = vld [vmem:[#allocation9] sm:$0xf]
    %v1686 = vld [vmem:[#allocation9 + $0x4] sm:$0xf]
    %v1687 = vld [vmem:[#allocation9 + $0x8] sm:$0xf]
    %v1688 = vld [vmem:[#allocation9 + $0xc] sm:$0xf]
    %v1689 = vld [vmem:[#allocation9 + $0x10] sm:$0xf]
    %v1690 = vld [vmem:[#allocation9 + $0x14] sm:$0xf]
    %v1691 = vld [vmem:[#allocation9 + $0x18] sm:$0xf]
    %v1692 = vld [vmem:[#allocation9 + $0x1c] sm:$0xf]
    %v1693 = vld [vmem:[#allocation9 + $0x20] sm:$0xf]
    %v1694 = vld [vmem:[#allocation9 + $0x24] sm:$0xf]
    %v1695 = vld [vmem:[#allocation9 + $0x28] sm:$0xf]
    %v1696 = vld [vmem:[#allocation9 + $0x2c] sm:$0xf]
    %v1697 = vld [vmem:[#allocation9 + $0x30] sm:$0xf]
    %v1698 = vld [vmem:[#allocation9 + $0x34] sm:$0xf]
    %v1699 = vld [vmem:[#allocation9 + $0x38] sm:$0xf]
    %v1700 = vld [vmem:[#allocation9 + $0x3c] sm:$0xf]
    %v1701 = vld [vmem:[%s10] sm:$0x1]
    %v1703 = vlaneseq
    %v1704 = vshrl.u32 %v1703, 7
    %v1705 = vsub.s32 0, %v1704
    %v1706 = vrot.slane %v1701, %v1705
    %v1724 = vunpack.c.l.b16 %v1685
    %v1725 = vunpack.c.l.b16 %v1686
    %v1726 = vunpack.c.l.b16 %v1687
    %v1727 = vunpack.c.l.b16 %v1688
    %v1728 = vunpack.c.l.b16 %v1689
    %v1729 = vunpack.c.l.b16 %v1690
    %v1730 = vunpack.c.l.b16 %v1691
    %v1731 = vunpack.c.l.b16 %v1692
    %v1732 = vunpack.c.l.b16 %v1693
    %v1733 = vunpack.c.l.b16 %v1694
    %v1734 = vunpack.c.l.b16 %v1695
    %v1735 = vunpack.c.l.b16 %v1696
    %v1736 = vunpack.c.l.b16 %v1697
    %v1737 = vunpack.c.l.b16 %v1698
    %v1738 = vunpack.c.l.b16 %v1699
    %v1739 = vunpack.c.l.b16 %v1700
    %v1740 = vpack.c.b16 %v1725, %v1724
    %v1741 = vpack.c.b16 %v1727, %v1726
    %v1742 = vpack.c.b16 %v1729, %v1728
    %v1743 = vpack.c.b16 %v1731, %v1730
    %v1744 = vpack.c.b16 %v1733, %v1732
    %v1745 = vpack.c.b16 %v1735, %v1734
    %v1746 = vpack.c.b16 %v1737, %v1736
    %v1747 = vpack.c.b16 %v1739, %v1738
    %1756 = vmatprep.subr.bf16.mxu0 0
    %1757 = vmatpush1.bf16.msra.mxu0 %v1740
    %1758 = vmatprep.subr.bf16.mxu0 0
    %1759 = vmatpush1.bf16.msra.mxu0 %v1741
    %1760 = vmatprep.subr.bf16.mxu0 0
    %1761 = vmatpush1.bf16.msra.mxu0 %v1742
    %1762 = vmatprep.subr.bf16.mxu0 0
    %1763 = vmatpush1.bf16.msra.mxu0 %v1743
    %1764 = vmatprep.subr.bf16.mxu0 0
    %1765 = vmatpush1.bf16.msra.mxu0 %v1744
    %1766 = vmatprep.subr.bf16.mxu0 0
    %1767 = vmatpush1.bf16.msra.mxu0 %v1745
    %1768 = vmatprep.subr.bf16.mxu0 0
    %1769 = vmatpush1.bf16.msra.mxu0 %v1746
    %1770 = vmatprep.subr.bf16.mxu0 0
    %1771 = vmatpush1.bf16.msra.mxu0 %v1747
    %1772 = vmatprep.subr.bf16.mxu0 0
    %1773 = vmatpush1.bf16.msra.mxu0 0
    %1774 = vmatprep.subr.bf16.mxu0 0
    %1775 = vmatpush1.bf16.msra.mxu0 0
    %1776 = vmatprep.subr.bf16.mxu0 0
    %1777 = vmatpush1.bf16.msra.mxu0 0
    %1778 = vmatprep.subr.bf16.mxu0 0
    %1779 = vmatpush1.bf16.msra.mxu0 0
    %1780 = vmatprep.subr.bf16.mxu0 0
    %1781 = vmatpush1.bf16.msra.mxu0 0
    %1782 = vmatprep.subr.bf16.mxu0 0
    %1783 = vmatpush1.bf16.msra.mxu0 0
    %1784 = vmatprep.subr.bf16.mxu0 0
    %1785 = vmatpush1.bf16.msra.mxu0 0
    %1786 = vmatprep.subr.bf16.mxu0 0
    %1787 = vmatpush1.bf16.msra.mxu0 0
    %1788 = vmatprep.mubr.bf16.mxu0 0
    %1789 = vmatmul.mubr.bf16.gmra.mrb[0].mxu0 %v1684
    %v1790 = vpop.f32.mrb[0].mxu0
    %v1791 = vadd.f32 %v1706, %v1790
    %v1792 = vpop.f32.mrb[0].mxu0
    %v1793 = vpop.f32.mrb[0].mxu0
    %v1794 = vadd.f32 %v1706, %v1793
    %v1795 = vpop.f32.mrb[0].mxu0
    %1796 = vdwg.mxu0
    %v1797 = vmax.f32 %v1791, 0.0
    %v1798 = vmax.f32 %v1794, 0.0
    %v1799 = vpack.c.bf16 %v1798, %v1797
    %v1800 = vld [vmem:[#allocation10] sm:$0xf]
    %v1801 = vld [vmem:[#allocation10 + $0x4] sm:$0xf]
    %v1802 = vld [vmem:[#allocation10 + $0x8] sm:$0xf]
    %v1803 = vld [vmem:[#allocation10 + $0xc] sm:$0xf]
    %v1804 = vld [vmem:[#allocation10 + $0x10] sm:$0xf]
    %v1805 = vld [vmem:[#allocation10 + $0x14] sm:$0xf]
    %v1806 = vld [vmem:[#allocation10 + $0x18] sm:$0xf]
    %v1807 = vld [vmem:[#allocation10 + $0x1c] sm:$0xf]
    %v1808 = vld [vmem:[#allocation10 + $0x20] sm:$0xf]
    %v1809 = vld [vmem:[#allocation10 + $0x24] sm:$0xf]
    %v1810 = vld [vmem:[#allocation10 + $0x28] sm:$0xf]
    %v1811 = vld [vmem:[#allocation10 + $0x2c] sm:$0xf]
    %v1812 = vld [vmem:[#allocation10 + $0x30] sm:$0xf]
    %v1813 = vld [vmem:[#allocation10 + $0x34] sm:$0xf]
    %v1814 = vld [vmem:[#allocation10 + $0x38] sm:$0xf]
    %v1815 = vld [vmem:[#allocation10 + $0x3c] sm:$0xf]
    %v1816 = vld [vmem:[%s12] sm:$0x1]
    %v1818 = vlaneseq
    %v1819 = vshrl.u32 %v1818, 7
    %v1820 = vsub.s32 0, %v1819
    %v1821 = vrot.slane %v1816, %v1820
    %v1839 = vunpack.c.l.b16 %v1800
    %v1840 = vunpack.c.l.b16 %v1801
    %v1841 = vunpack.c.l.b16 %v1802
    %v1842 = vunpack.c.l.b16 %v1803
    %v1843 = vunpack.c.l.b16 %v1804
    %v1844 = vunpack.c.l.b16 %v1805
    %v1845 = vunpack.c.l.b16 %v1806
    %v1846 = vunpack.c.l.b16 %v1807
    %v1847 = vunpack.c.l.b16 %v1808
    %v1848 = vunpack.c.l.b16 %v1809
    %v1849 = vunpack.c.l.b16 %v1810
    %v1850 = vunpack.c.l.b16 %v1811
    %v1851 = vunpack.c.l.b16 %v1812
    %v1852 = vunpack.c.l.b16 %v1813
    %v1853 = vunpack.c.l.b16 %v1814
    %v1854 = vunpack.c.l.b16 %v1815
    %v1855 = vpack.c.b16 %v1840, %v1839
    %v1856 = vpack.c.b16 %v1842, %v1841
    %v1857 = vpack.c.b16 %v1844, %v1843
    %v1858 = vpack.c.b16 %v1846, %v1845
    %v1859 = vpack.c.b16 %v1848, %v1847
    %v1860 = vpack.c.b16 %v1850, %v1849
    %v1861 = vpack.c.b16 %v1852, %v1851
    %v1862 = vpack.c.b16 %v1854, %v1853
    %1871 = vmatprep.subr.bf16.mxu0 0
    %1872 = vmatpush1.bf16.msra.mxu0 %v1855
    %1873 = vmatprep.subr.bf16.mxu0 0
    %1874 = vmatpush1.bf16.msra.mxu0 %v1856
    %1875 = vmatprep.subr.bf16.mxu0 0
    %1876 = vmatpush1.bf16.msra.mxu0 %v1857
    %1877 = vmatprep.subr.bf16.mxu0 0
    %1878 = vmatpush1.bf16.msra.mxu0 %v1858
    %1879 = vmatprep.subr.bf16.mxu0 0
    %1880 = vmatpush1.bf16.msra.mxu0 %v1859
    %1881 = vmatprep.subr.bf16.mxu0 0
    %1882 = vmatpush1.bf16.msra.mxu0 %v1860
    %1883 = vmatprep.subr.bf16.mxu0 0
    %1884 = vmatpush1.bf16.msra.mxu0 %v1861
    %1885 = vmatprep.subr.bf16.mxu0 0
    %1886 = vmatpush1.bf16.msra.mxu0 %v1862
    %1887 = vmatprep.subr.bf16.mxu0 0
    %1888 = vmatpush1.bf16.msra.mxu0 0
    %1889 = vmatprep.subr.bf16.mxu0 0
    %1890 = vmatpush1.bf16.msra.mxu0 0
    %1891 = vmatprep.subr.bf16.mxu0 0
    %1892 = vmatpush1.bf16.msra.mxu0 0
    %1893 = vmatprep.subr.bf16.mxu0 0
    %1894 = vmatpush1.bf16.msra.mxu0 0
    %1895 = vmatprep.subr.bf16.mxu0 0
    %1896 = vmatpush1.bf16.msra.mxu0 0
    %1897 = vmatprep.subr.bf16.mxu0 0
    %1898 = vmatpush1.bf16.msra.mxu0 0
    %1899 = vmatprep.subr.bf16.mxu0 0
    %1900 = vmatpush1.bf16.msra.mxu0 0
    %1901 = vmatprep.subr.bf16.mxu0 0
    %1902 = vmatpush1.bf16.msra.mxu0 0
    %1903 = vmatprep.mubr.bf16.mxu0 0
    %1904 = vmatmul.mubr.bf16.gmra.mrb[0].mxu0 %v1799
    %v1905 = vpop.f32.mrb[0].mxu0
    %v1906 = vadd.f32 %v1821, %v1905
    %v1907 = vpop.f32.mrb[0].mxu0
    %v1908 = vpop.f32.mrb[0].mxu0
    %v1909 = vadd.f32 %v1821, %v1908
    %v1910 = vpop.f32.mrb[0].mxu0
    %1911 = vdwg.mxu0
    %v1912 = vsub.f32 0.0, %v1906
    %v1913 = vsub.f32 0.0, %v1909
    %v1914 = vmul.f32 %v1912, 1.442695
    %v1915 = vpow.pop %v1914
    %v1916 = vmul.f32 %v1913, 1.442695
    %v1917 = vpow.pop %v1916
    %v1918 = vadd.f32 %v1915, 1.0
    %v1919 = vadd.f32 %v1917, 1.0
    %v1920 = vrcp.pop %v1918
    %v1921 = vrcp.pop %v1919
    %1922 = vst [vmem:[%s13] sm:$0xff] %v1920
    %1923 = vst [vmem:[%s13 + $0x8] sm:$0xff] %v1921
    // Predicated region
    $region78: #{_lambda_.1} parent=1 // pred_check
      _
    $region79: #{_lambda_.1} parent=1 // pred_check_branch
      %1925 = sbr.rel (0) target = $region81
    $region80: #{_lambda_.1} parent=1 // pred_region
      _
    $region81: #{_lambda_.1} parent=1 // pred_fallthru
      _
    // Predicated region
    $region82: #{_lambda_.1} parent=1 // pred_check
      _
    $region83: #{_lambda_.1} parent=1 // pred_check_branch
      %1927 = sbr.rel (0) target = $region85
    $region84: #{_lambda_.1} parent=1 // pred_region
      _
    $region85: #{_lambda_.1} parent=1 // pred_fallthru
      _
    %1928 = vsyncpa [#allocation3], 1
    %1929 = vsyncpa [#allocation5], 1
    %1930 = vsyncpa [#allocation8], 1
    %1931 = vsyncpa [#allocation11], 1

</llo_original>
